<compile_context>
chip_gen: v6e
topology: v6e:2x2x1
jax: 0.10.0
libtpu: 0.0.40
codegen_flags: <defaults>
</compile_context>

<pallas_src>
import functools

import jax
import jax.numpy as jnp
from jax import lax
from jax.experimental import pallas as pl
from jax.experimental.pallas import tpu as pltpu


def _round_up(v, m):
    return (v + m - 1) // m * m


# --------------------------------------------------------------------------- #
# fused kernel: message + dst-segment scatter-add + (1+eps)*x + folded MLP
# --------------------------------------------------------------------------- #
def gine_fused_kernel(lo_ref, cnt_ref,                # scalar prefetch (SMEM)
                      ope_ref,                         # (1,1) f32 SMEM  (1 + eps)
                      x_ref,                           # (TN, Dp) f32  node tile
                      dst_ref,                         # (TE, 1)  i32  sorted dst
                      xsrc_ref,                        # (TE, Dp) bf16 x[src] rows
                      em_ref,                          # (TE, Dp) bf16 edge embeddings
                      w1_ref, b1_ref, w2_ref, b2_ref,  # MLP (BN folded), w* bf16 / b* f32
                      o_ref,                           # (TN, Dp) f32  output tile
                      acc_ref):                        # (TN, Dp) f32  scratch accumulator
    i = pl.program_id(0)
    k = pl.program_id(1)
    tile_n = acc_ref.shape[0]
    tile_e = dst_ref.shape[0]

    @pl.when(k == 0)
    def _():
        acc_ref[...] = jnp.zeros_like(acc_ref)

    # Only edge blocks that contain edges destined to this node tile are
    # processed; for k >= cnt the index_map repeats the previous block (no new
    # DMA) and compute is skipped here (also prevents double counting).
    @pl.when(k < cnt_ref[i])
    def _():
        # GINE message: m_e = relu(x[src_e] + (edge_attr_e @ We + be))   (bf16)
        msg = jnp.maximum(xsrc_ref[...] + em_ref[...], 0).astype(jnp.bfloat16)
        # In-kernel one-hot of the local dst index (0/1 exact in bf16).  Edges
        # whose dst lies outside this node tile (incl. padded edges, dst = Np)
        # get an all-zero row and contribute nothing.
        local = dst_ref[...] - i * tile_n                               # (TE, 1)
        cols = lax.broadcasted_iota(jnp.int32, (tile_e, tile_n), 1)     # (TE, TN)
        onehot = (local == cols).astype(jnp.bfloat16)
        # scatter-add: contract the edge axis on the MXU, f32 accumulation.
        acc_ref[...] += lax.dot_general(
            onehot, msg,
            dimension_numbers=(((0,), (0,)), ((), ())),
            preferred_element_type=jnp.float32)

    @pl.when(k == pl.num_programs(1) - 1)
    def _():
        h = ope_ref[0, 0] * x_ref[...] + acc_ref[...]          # (1+eps)*x + aggr
        h1 = jnp.dot(h.astype(jnp.bfloat16), w1_ref[...],
                     preferred_element_type=jnp.float32) + b1_ref[...]
        h1 = jnp.maximum(h1, 0.0)                              # ReLU (BN1 folded)
        h2 = jnp.dot(h1.astype(jnp.bfloat16), w2_ref[...],
                     preferred_element_type=jnp.float32) + b2_ref[...]
        o_ref[...] = jnp.maximum(h2, 0.0)                      # BN2 folded; Dropout = id (eval)


# --------------------------------------------------------------------------- #
# wrapper: BN folding, edge sort + block ranges, XLA gather, one pallas_call
# --------------------------------------------------------------------------- #
@functools.partial(jax.jit, static_argnames=("tile_n", "tile_e"))
def gine_layer_light(x, edge_index, edge_attr, params, *, tile_n=128, tile_e=256):
    """x: [N, D] f32, edge_index: [2, E] i32 (row0 = src j, row1 = dst i),
       edge_attr: [E, De] f32."""
    N, D = x.shape
    E, De = edge_attr.shape
    H = 2 * D

    f32, bf16, i32 = jnp.float32, jnp.bfloat16, jnp.int32

    Dp = _round_up(D, 128)
    Hp = _round_up(H, 128)
    Np = _round_up(N, tile_n)
    if (Np // tile_n) % 2 == 1:          # even node-tile count -> both v7x cores busy
        Np += tile_n
    Ep = _round_up(E, tile_e)
    nt_n = Np // tile_n
    n_eblk = Ep // tile_e

    # ---- fold eval-mode BatchNorms and biases into the MLP (host-side algebra).
    w1f = params["w1"] * params["bn1_scale"]
    b1f = params["b1"] * params["bn1_scale"] + params["bn1_shift"]
    w2f = params["w2"] * params["bn2_scale"]
    b2f = params["b2"] * params["bn2_scale"] + params["bn2_shift"]

    # ---- edge embedding with the natural edge dim (no 16->128 zero padding).
    edge_emb = edge_attr @ params["we"] + params["be"]            # [E, D] f32

    # ---- pad, then sort edges by destination (makes the scatter segment-contiguous).
    dst_p = jnp.full((Ep,), Np, i32).at[:E].set(edge_index[1])    # sentinel Np sorts last
    src_p = jnp.zeros((Ep,), i32).at[:E].set(edge_index[0])
    em_p = jnp.zeros((Ep, Dp), f32).at[:E, :D].set(edge_emb)
    perm = jnp.argsort(dst_p)
    dst_s = dst_p[perm]
    src_s = src_p[perm]
    em_s = em_p[perm].astype(bf16)                                # [Ep, Dp] bf16

    # ---- index-based gather of source-node rows (XLA gather; O(E*D)).
    x_pad = jnp.zeros((Np, Dp), f32).at[:N, :D].set(x)
    xsrc_s = x_pad[src_s].astype(bf16)                            # [Ep, Dp] bf16

    # ---- per node tile: contiguous edge-block range (scalar prefetch tables).
    bounds = jnp.arange(nt_n + 1, dtype=i32) * tile_n
    starts = jnp.searchsorted(dst_s, bounds[:-1], side="left").astype(i32)
    ends = jnp.searchsorted(dst_s, bounds[1:], side="left").astype(i32)
    has = ends > starts
    first_blk = jnp.minimum(starts // tile_e, n_eblk - 1)
    last_blk = jnp.where(has, (ends - 1) // tile_e, first_blk)
    blk_lo = first_blk.astype(i32)                                # [nt_n] i32
    blk_cnt = jnp.where(has, last_blk - first_blk + 1, 0).astype(i32)

    # ---- padded / folded parameters (bf16 weights, f32 biases), SMEM scalar.
    w1_p = jnp.zeros((Dp, Hp), f32).at[:D, :H].set(w1f).astype(bf16)
    b1_p = jnp.zeros((1, Hp), f32).at[:, :H].set(b1f)
    w2_p = jnp.zeros((Hp, Dp), f32).at[:H, :D].set(w2f).astype(bf16)
    b2_p = jnp.zeros((1, Dp), f32).at[:, :D].set(b2f)
    ope = (1.0 + params["eps"]).reshape(1, 1).astype(f32)
    dst2 = dst_s.reshape(Ep, 1)

    # data-dependent edge-block index map; clamped -> repeated block => no re-DMA.
    def edge_map(i, k, lo_ref, cnt_ref):
        j = lo_ref[i] + jnp.minimum(k, jnp.maximum(cnt_ref[i] - 1, 0))
        return (j, 0)

    grid_spec = pltpu.PrefetchScalarGridSpec(
        num_scalar_prefetch=2,
        grid=(nt_n, n_eblk),                              # edge (reduction) axis last
        in_specs=[
            pl.BlockSpec(memory_space=pltpu.MemorySpace.SMEM),         # (1 + eps)
            pl.BlockSpec((tile_n, Dp), lambda i, k, lo, cnt: (i, 0)),  # x node tile
            pl.BlockSpec((tile_e, 1), edge_map),                       # sorted dst
            pl.BlockSpec((tile_e, Dp), edge_map),                      # x[src] rows
            pl.BlockSpec((tile_e, Dp), edge_map),                      # edge embeddings
            pl.BlockSpec((Dp, Hp), lambda i, k, lo, cnt: (0, 0)),      # W1 (bf16, BN folded)
            pl.BlockSpec((1, Hp), lambda i, k, lo, cnt: (0, 0)),       # b1
            pl.BlockSpec((Hp, Dp), lambda i, k, lo, cnt: (0, 0)),      # W2 (bf16, BN folded)
            pl.BlockSpec((1, Dp), lambda i, k, lo, cnt: (0, 0)),       # b2
        ],
        out_specs=pl.BlockSpec((tile_n, Dp), lambda i, k, lo, cnt: (i, 0)),
        scratch_shapes=[pltpu.VMEM((tile_n, Dp), f32)],
    )

    out_p = pl.pallas_call(
        gine_fused_kernel,
        out_shape=jax.ShapeDtypeStruct((Np, Dp), f32),
        grid_spec=grid_spec,
        compiler_params=pltpu.CompilerParams(
            dimension_semantics=("parallel", "arbitrary")),
    )(blk_lo, blk_cnt, ope, x_pad, dst2, xsrc_s, em_s, w1_p, b1_p, w2_p, b2_p)

    return out_p[:N, :D]


# --------------------------------------------------------------------------- #
# parameter construction + pure-JAX reference (f32, eval-mode semantics)
# --------------------------------------------------------------------------- #
def fold_bn(gamma, beta, mean, var, eps=1e-5):
    scale = gamma / jnp.sqrt(var + eps)
    shift = beta - mean * scale
    return scale[None, :], shift[None, :]


def make_params(key, node_dim, edge_dim):
    ks = jax.random.split(key, 16)
    hid = 2 * node_dim
    p = {}
    p["eps"] = jnp.zeros((1,), jnp.float32)   # GINEConv(eps=0.0, train_eps=True)
    p["we"] = jax.random.normal(ks[0], (edge_dim, node_dim), jnp.float32) * 0.1
    p["be"] = (jax.random.normal(ks[1], (node_dim,), jnp.float32) * 0.1)[None, :]
    p["w1"] = jax.random.normal(ks[2], (node_dim, hid), jnp.float32) * 0.1
    p["b1"] = (jax.random.normal(ks[3], (hid,), jnp.float32) * 0.1)[None, :]
    p["w2"] = jax.random.normal(ks[4], (hid, node_dim), jnp.float32) * 0.1
    p["b2"] = (jax.random.normal(ks[5], (node_dim,), jnp.float32) * 0.1)[None, :]
    # mlp BatchNorm1d(2*node_dim) — eval-mode running stats
    g1 = jax.random.uniform(ks[6], (hid,), jnp.float32, 0.5, 1.5)
    b1 = jax.random.normal(ks[7], (hid,), jnp.float32) * 0.1
    m1 = jax.random.normal(ks[8], (hid,), jnp.float32) * 0.1
    v1 = jax.random.uniform(ks[9], (hid,), jnp.float32, 0.5, 1.5)
    p["bn1_scale"], p["bn1_shift"] = fold_bn(g1, b1, m1, v1)
    # outer PyGBatchNorm(node_dim)
    g2 = jax.random.uniform(ks[10], (node_dim,), jnp.float32, 0.5, 1.5)
    b2 = jax.random.normal(ks[11], (node_dim,), jnp.float32) * 0.1
    m2 = jax.random.normal(ks[12], (node_dim,), jnp.float32) * 0.1
    v2 = jax.random.uniform(ks[13], (node_dim,), jnp.float32, 0.5, 1.5)
    p["bn2_scale"], p["bn2_shift"] = fold_bn(g2, b2, m2, v2)
    return p


def reference(x, edge_index, edge_attr, p):
    src, dst = edge_index[0], edge_index[1]
    edge_emb = edge_attr @ p["we"] + p["be"]
    msg = jnp.maximum(x[src] + edge_emb, 0.0)
    agg = jnp.zeros_like(x).at[dst].add(msg)
    h = (1.0 + p["eps"][0]) * x + agg
    h1 = jnp.maximum((h @ p["w1"] + p["b1"]) * p["bn1_scale"] + p["bn1_shift"], 0.0)
    h2 = (h1 @ p["w2"] + p["b2"]) * p["bn2_scale"] + p["bn2_shift"]
    return jnp.maximum(h2, 0.0)


if __name__ == "__main__":
    node_dim, edge_dim = 32, 16
    N, E = 160, 384   # pads to 256 nodes (2 tiles) / 512 edges (2 blocks) -> grid (2, 2)

    key = jax.random.PRNGKey(0)
    kx, ke, ks, kd, kp = jax.random.split(key, 5)

    x = jax.random.normal(kx, (N, node_dim), jnp.float32)
    edge_attr = jax.random.normal(ke, (E, edge_dim), jnp.float32)
    src = jax.random.randint(ks, (E,), 0, N, dtype=jnp.int32)
    dst = jax.random.randint(kd, (E,), 0, N, dtype=jnp.int32)
    edge_index = jnp.stack([src, dst], axis=0)

    params = make_params(kp, node_dim, edge_dim)

    out = jax.block_until_ready(gine_layer_light(x, edge_index, edge_attr, params))
    ref = reference(x, edge_index, edge_attr, params)

    assert out.shape == (N, node_dim)
    # bf16 messages + bf16 MLP weights with f32 accumulation: relaxed tolerance
    # vs the pure-f32 reference.
    err = float(jnp.max(jnp.abs(out - ref)))
    scale = float(jnp.max(jnp.abs(ref)))
    assert err <= 6e-2 * scale + 6e-2, (err, scale)
    print("KERNEL_OK")
</pallas_src>

<mosaic_0001>
module attributes {stable_mosaic.version = 11 : i64} {
  func.func @gine_fused_kernel(%arg0: i32, %arg1: i32, %arg2: memref<2xi32, #tpu.memory_space<smem>>, %arg3: memref<2xi32, #tpu.memory_space<smem>>, %arg4: memref<1x1xf32, #tpu.memory_space<smem>>, %arg5: memref<128x128xf32, #tpu.memory_space<vmem>>, %arg6: memref<256x1xi32, #tpu.memory_space<vmem>>, %arg7: memref<256x128xbf16, #tpu.memory_space<vmem>>, %arg8: memref<256x128xbf16, #tpu.memory_space<vmem>>, %arg9: memref<128x128xbf16, #tpu.memory_space<vmem>>, %arg10: memref<1x128xf32, #tpu.memory_space<vmem>>, %arg11: memref<128x128xbf16, #tpu.memory_space<vmem>>, %arg12: memref<1x128xf32, #tpu.memory_space<vmem>>, %arg13: memref<128x128xf32, #tpu.memory_space<vmem>>, %arg14: memref<128x128xf32, #tpu.memory_space<vmem>>) attributes {dimension_semantics = [#tpu.dimension_semantics<parallel>, #tpu.dimension_semantics<arbitrary>], iteration_bounds = array<i64: 2, 2>, scalar_prefetch = 2 : i64, scratch_operands = 1 : i64, tpu.core_type = #tpu.core_type<tc>, window_params = [{transform_indices = @transform_0, window_bounds = array<i64: 1, 1>}, {transform_indices = @transform_1, window_bounds = array<i64: 128, 128>}, {transform_indices = @transform_2, window_bounds = array<i64: 256, 1>}, {transform_indices = @transform_3, window_bounds = array<i64: 256, 128>}, {transform_indices = @transform_4, window_bounds = array<i64: 256, 128>}, {pipeline_mode = #tpu.pipeline_mode<synchronous>, transform_indices = @transform_5, window_bounds = array<i64: 128, 128>}, {pipeline_mode = #tpu.pipeline_mode<synchronous>, transform_indices = @transform_6, window_bounds = array<i64: 1, 128>}, {pipeline_mode = #tpu.pipeline_mode<synchronous>, transform_indices = @transform_7, window_bounds = array<i64: 128, 128>}, {pipeline_mode = #tpu.pipeline_mode<synchronous>, transform_indices = @transform_8, window_bounds = array<i64: 1, 128>}, {transform_indices = @transform_9, window_bounds = array<i64: 128, 128>}]} {
    %c0_i32 = arith.constant 0 : i32
    %0 = arith.cmpi eq, %arg1, %c0_i32 : i32
    %1 = arith.extui %0 : i1 to i32
    %c0_i32_0 = arith.constant 0 : i32
    %2 = arith.cmpi ne, %1, %c0_i32_0 : i32
    scf.if %2 {
      %cst = arith.constant 0.000000e+00 : f32
      %11 = vector.broadcast %cst : f32 to vector<128x128xf32>
      %c0 = arith.constant 0 : index
      %c0_3 = arith.constant 0 : index
      %12 = vector.load %arg14[%c0, %c0_3] : memref<128x128xf32, #tpu.memory_space<vmem>>, vector<128x128xf32>
      tpu.vector_store %arg14[%c0, %c0_3], %11 {strides = array<i32>} : memref<128x128xf32, #tpu.memory_space<vmem>>, vector<128x128xf32>,
    } else {
    }
    %3 = arith.index_cast %arg0 : i32 to index
    %4 = memref.load %arg3[%3] : memref<2xi32, #tpu.memory_space<smem>>
    %5 = arith.cmpi slt, %arg1, %4 : i32
    %6 = arith.extui %5 : i1 to i32
    %c0_i32_1 = arith.constant 0 : i32
    %7 = arith.cmpi ne, %6, %c0_i32_1 : i32
    scf.if %7 {
      %c0 = arith.constant 0 : index
      %c0_3 = arith.constant 0 : index
      %11 = vector.load %arg7[%c0, %c0_3] : memref<256x128xbf16, #tpu.memory_space<vmem>>, vector<256x128xbf16>
      %c0_4 = arith.constant 0 : index
      %c0_5 = arith.constant 0 : index
      %12 = vector.load %arg8[%c0_4, %c0_5] : memref<256x128xbf16, #tpu.memory_space<vmem>>, vector<256x128xbf16>
      %13 = arith.addf %11, %12 : vector<256x128xbf16>
      %cst = arith.constant 0.000000e+00 : bf16
      %14 = vector.broadcast %cst : bf16 to vector<256x128xbf16>
      %15 = arith.maximumf %13, %14 : vector<256x128xbf16>
      %c0_6 = arith.constant 0 : index
      %c0_7 = arith.constant 0 : index
      %16 = vector.load %arg6[%c0_6, %c0_7] : memref<256x1xi32, #tpu.memory_space<vmem>>, vector<256x1xi32>
      %c128_i32 = arith.constant 128 : i32
      %17 = arith.muli %arg0, %c128_i32 : i32
      %18 = vector.broadcast %17 : i32 to vector<256x1xi32>
      %19 = arith.subi %16, %18 : vector<256x1xi32>
      %20 = tpu.iota {dimensions = array<i32: 1>} : vector<256x128xi32>
      %21 = vector.broadcast %19 : vector<256x1xi32> to vector<256x128xi32>
      %22 = arith.cmpi eq, %21, %20 : vector<256x128xi32>
      %23 = arith.extui %22 : vector<256x128xi1> to vector<256x128xi32>
      %24 = arith.sitofp %23 : vector<256x128xi32> to vector<256x128xf32>
      %25 = arith.truncf %24 : vector<256x128xf32> to vector<256x128xbf16>
      %c0_8 = arith.constant 0 : index
      %c0_9 = arith.constant 0 : index
      %26 = vector.load %arg14[%c0_8, %c0_9] : memref<128x128xf32, #tpu.memory_space<vmem>>, vector<128x128xf32>
      %cst_10 = arith.constant dense<0.000000e+00> : vector<128x128xf32>
      %27 = tpu.matmul %25, %15, %cst_10 {dimension_numbers = #tpu.dot_dimension_numbers<[0], [0], [1], [1], [0, 1, 1, 1], [], []>} : vector<256x128xbf16>, vector<256x128xbf16>, vector<128x128xf32> -> vector<128x128xf32>
      %28 = arith.addf %26, %27 : vector<128x128xf32>
      %c0_11 = arith.constant 0 : index
      %c0_12 = arith.constant 0 : index
      %29 = vector.load %arg14[%c0_11, %c0_12] : memref<128x128xf32, #tpu.memory_space<vmem>>, vector<128x128xf32>
      tpu.vector_store %arg14[%c0_11, %c0_12], %28 {strides = array<i32>} : memref<128x128xf32, #tpu.memory_space<vmem>>, vector<128x128xf32>,
    } else {
    }
    %c1_i32 = arith.constant 1 : i32
    %8 = arith.cmpi eq, %arg1, %c1_i32 : i32
    %9 = arith.extui %8 : i1 to i32
    %c0_i32_2 = arith.constant 0 : i32
    %10 = arith.cmpi ne, %9, %c0_i32_2 : i32
    scf.if %10 {
      %c0 = arith.constant 0 : index
      %c0_3 = arith.constant 0 : index
      %11 = memref.load %arg4[%c0, %c0_3] : memref<1x1xf32, #tpu.memory_space<smem>>
      %c0_4 = arith.constant 0 : index
      %c0_5 = arith.constant 0 : index
      %12 = vector.load %arg5[%c0_4, %c0_5] : memref<128x128xf32, #tpu.memory_space<vmem>>, vector<128x128xf32>
      %13 = vector.broadcast %11 : f32 to vector<128x128xf32>
      %14 = arith.mulf %13, %12 : vector<128x128xf32>
      %c0_6 = arith.constant 0 : index
      %c0_7 = arith.constant 0 : index
      %15 = vector.load %arg14[%c0_6, %c0_7] : memref<128x128xf32, #tpu.memory_space<vmem>>, vector<128x128xf32>
      %16 = arith.addf %14, %15 : vector<128x128xf32>
      %17 = arith.truncf %16 : vector<128x128xf32> to vector<128x128xbf16>
      %c0_8 = arith.constant 0 : index
      %c0_9 = arith.constant 0 : index
      %18 = vector.load %arg9[%c0_8, %c0_9] : memref<128x128xbf16, #tpu.memory_space<vmem>>, vector<128x128xbf16>
      %cst = arith.constant dense<0.000000e+00> : vector<128x128xf32>
      %19 = tpu.matmul %17, %18, %cst {dimension_numbers = #tpu.dot_dimension_numbers<[1], [0], [0], [1], [0, 0, 1, 1], [], []>} : vector<128x128xbf16>, vector<128x128xbf16>, vector<128x128xf32> -> vector<128x128xf32>
      %c0_10 = arith.constant 0 : index
      %c0_11 = arith.constant 0 : index
      %20 = vector.load %arg10[%c0_10, %c0_11] : memref<1x128xf32, #tpu.memory_space<vmem>>, vector<1x128xf32>
      %21 = vector.broadcast %20 : vector<1x128xf32> to vector<128x128xf32>
      %22 = arith.addf %19, %21 : vector<128x128xf32>
      %cst_12 = arith.constant 0.000000e+00 : f32
      %23 = vector.broadcast %cst_12 : f32 to vector<128x128xf32>
      %24 = arith.maximumf %22, %23 : vector<128x128xf32>
      %25 = arith.truncf %24 : vector<128x128xf32> to vector<128x128xbf16>
      %c0_13 = arith.constant 0 : index
      %c0_14 = arith.constant 0 : index
      %26 = vector.load %arg11[%c0_13, %c0_14] : memref<128x128xbf16, #tpu.memory_space<vmem>>, vector<128x128xbf16>
      %cst_15 = arith.constant dense<0.000000e+00> : vector<128x128xf32>
      %27 = tpu.matmul %25, %26, %cst_15 {dimension_numbers = #tpu.dot_dimension_numbers<[1], [0], [0], [1], [0, 0, 1, 1], [], []>} : vector<128x128xbf16>, vector<128x128xbf16>, vector<128x128xf32> -> vector<128x128xf32>
      %c0_16 = arith.constant 0 : index
      %c0_17 = arith.constant 0 : index
      %28 = vector.load %arg12[%c0_16, %c0_17] : memref<1x128xf32, #tpu.memory_space<vmem>>, vector<1x128xf32>
      %29 = vector.broadcast %28 : vector<1x128xf32> to vector<128x128xf32>
      %30 = arith.addf %27, %29 : vector<128x128xf32>
      %cst_18 = arith.constant 0.000000e+00 : f32
      %31 = vector.broadcast %cst_18 : f32 to vector<128x128xf32>
      %32 = arith.maximumf %30, %31 : vector<128x128xf32>
      %c0_19 = arith.constant 0 : index
      %c0_20 = arith.constant 0 : index
      %33 = vector.load %arg13[%c0_19, %c0_20] : memref<128x128xf32, #tpu.memory_space<vmem>>, vector<128x128xf32>
      tpu.vector_store %arg13[%c0_19, %c0_20], %32 {strides = array<i32>} : memref<128x128xf32, #tpu.memory_space<vmem>>, vector<128x128xf32>,
    } else {
    }
    return
  }
  func.func @transform_0(%arg0: i32, %arg1: i32, %arg2: memref<2xi32, #tpu.memory_space<smem>>, %arg3: memref<2xi32, #tpu.memory_space<smem>>) -> (i32, i32) {
    %c0_i32 = arith.constant 0 : i32
    %c0_i32_0 = arith.constant 0 : i32
    %c0_i32_1 = arith.constant 0 : i32
    return %c0_i32, %c0_i32_0 : i32, i32
  }
  func.func @transform_1(%arg0: i32, %arg1: i32, %arg2: memref<2xi32, #tpu.memory_space<smem>>, %arg3: memref<2xi32, #tpu.memory_space<smem>>) -> (i32, i32) {
    %c0_i32 = arith.constant 0 : i32
    %c0_i32_0 = arith.constant 0 : i32
    return %arg0, %c0_i32 : i32, i32
  }
  func.func @transform_2(%arg0: i32, %arg1: i32, %arg2: memref<2xi32, #tpu.memory_space<smem>>, %arg3: memref<2xi32, #tpu.memory_space<smem>>) -> (i32, i32) {
    %0 = arith.index_cast %arg0 : i32 to index
    %1 = memref.load %arg2[%0] : memref<2xi32, #tpu.memory_space<smem>>
    %2 = arith.index_cast %arg0 : i32 to index
    %3 = memref.load %arg3[%2] : memref<2xi32, #tpu.memory_space<smem>>
    %c1_i32 = arith.constant 1 : i32
    %4 = arith.subi %3, %c1_i32 : i32
    %c0_i32 = arith.constant 0 : i32
    %5 = arith.maxsi %4, %c0_i32 : i32
    %6 = arith.minsi %arg1, %5 : i32
    %7 = arith.addi %1, %6 : i32
    %c0_i32_0 = arith.constant 0 : i32
    %c0_i32_1 = arith.constant 0 : i32
    return %7, %c0_i32_0 : i32, i32
  }
  func.func @transform_3(%arg0: i32, %arg1: i32, %arg2: memref<2xi32, #tpu.memory_space<smem>>, %arg3: memref<2xi32, #tpu.memory_space<smem>>) -> (i32, i32) {
    %0 = arith.index_cast %arg0 : i32 to index
    %1 = memref.load %arg2[%0] : memref<2xi32, #tpu.memory_space<smem>>
    %2 = arith.index_cast %arg0 : i32 to index
    %3 = memref.load %arg3[%2] : memref<2xi32, #tpu.memory_space<smem>>
    %c1_i32 = arith.constant 1 : i32
    %4 = arith.subi %3, %c1_i32 : i32
    %c0_i32 = arith.constant 0 : i32
    %5 = arith.maxsi %4, %c0_i32 : i32
    %6 = arith.minsi %arg1, %5 : i32
    %7 = arith.addi %1, %6 : i32
    %c0_i32_0 = arith.constant 0 : i32
    %c0_i32_1 = arith.constant 0 : i32
    return %7, %c0_i32_0 : i32, i32
  }
  func.func @transform_4(%arg0: i32, %arg1: i32, %arg2: memref<2xi32, #tpu.memory_space<smem>>, %arg3: memref<2xi32, #tpu.memory_space<smem>>) -> (i32, i32) {
    %0 = arith.index_cast %arg0 : i32 to index
    %1 = memref.load %arg2[%0] : memref<2xi32, #tpu.memory_space<smem>>
    %2 = arith.index_cast %arg0 : i32 to index
    %3 = memref.load %arg3[%2] : memref<2xi32, #tpu.memory_space<smem>>
    %c1_i32 = arith.constant 1 : i32
    %4 = arith.subi %3, %c1_i32 : i32
    %c0_i32 = arith.constant 0 : i32
    %5 = arith.maxsi %4, %c0_i32 : i32
    %6 = arith.minsi %arg1, %5 : i32
    %7 = arith.addi %1, %6 : i32
    %c0_i32_0 = arith.constant 0 : i32
    %c0_i32_1 = arith.constant 0 : i32
    return %7, %c0_i32_0 : i32, i32
  }
  func.func @transform_5(%arg0: i32, %arg1: i32, %arg2: memref<2xi32, #tpu.memory_space<smem>>, %arg3: memref<2xi32, #tpu.memory_space<smem>>) -> (i32, i32) {
    %c0_i32 = arith.constant 0 : i32
    %c0_i32_0 = arith.constant 0 : i32
    %c0_i32_1 = arith.constant 0 : i32
    return %c0_i32, %c0_i32_0 : i32, i32
  }
  func.func @transform_6(%arg0: i32, %arg1: i32, %arg2: memref<2xi32, #tpu.memory_space<smem>>, %arg3: memref<2xi32, #tpu.memory_space<smem>>) -> (i32, i32) {
    %c0_i32 = arith.constant 0 : i32
    %c0_i32_0 = arith.constant 0 : i32
    %c0_i32_1 = arith.constant 0 : i32
    return %c0_i32, %c0_i32_0 : i32, i32
  }
  func.func @transform_7(%arg0: i32, %arg1: i32, %arg2: memref<2xi32, #tpu.memory_space<smem>>, %arg3: memref<2xi32, #tpu.memory_space<smem>>) -> (i32, i32) {
    %c0_i32 = arith.constant 0 : i32
    %c0_i32_0 = arith.constant 0 : i32
    %c0_i32_1 = arith.constant 0 : i32
    return %c0_i32, %c0_i32_0 : i32, i32
  }
  func.func @transform_8(%arg0: i32, %arg1: i32, %arg2: memref<2xi32, #tpu.memory_space<smem>>, %arg3: memref<2xi32, #tpu.memory_space<smem>>) -> (i32, i32) {
    %c0_i32 = arith.constant 0 : i32
    %c0_i32_0 = arith.constant 0 : i32
    %c0_i32_1 = arith.constant 0 : i32
    return %c0_i32, %c0_i32_0 : i32, i32
  }
  func.func @transform_9(%arg0: i32, %arg1: i32, %arg2: memref<2xi32, #tpu.memory_space<smem>>, %arg3: memref<2xi32, #tpu.memory_space<smem>>) -> (i32, i32) {
    %c0_i32 = arith.constant 0 : i32
    %c0_i32_0 = arith.constant 0 : i32
    return %arg0, %c0_i32 : i32, i32
  }
}

</mosaic_0001>

<llo_original>
// kernel: custom-call.3
$region0: #{custom-call.3}
  %s0 = inlined_call_operand.vmem [shape: u32[2], index: 0, kind: output, shape index: {}]

// kernel: gine_layer_light.1
$region0: #{gine_layer_light.1}
  #allocation0 [shape = 'u32[]', space=smem, size = 0x4, offset = 0x4, fixed_abs, tag = 'smem constant byte address 0x4 - core index']
  #allocation1 [shape = 'u32[144,128]{1,0:T(1,128)}', space=vmem, size = 0x12000, scoped, tag = 'internal scratch']
  #allocation2 [shape = 'f32[128,128]{1,0:T(8,128)}', space=vmem, size = 0x10000, scoped, tag = 'scratch operand']
  #allocation3 [shape = 's32[1]{0}', space=sflag, size = 0x4, scoped, tag = 'scoped memory for gine_layer_light.1']
  #allocation4 [shape = 'u8[512]{0}', space=smem, size = 0x200, scoped, tag = 'prefetched SMEM operand 0']
  #allocation5 [shape = 'u8[512]{0}', space=smem, size = 0x200, scoped, tag = 'prefetched SMEM operand 1']
  #allocation6 [shape = 'f32[1,1]{1,0:T(1,128)S(6)}', space=smem, size = 0x200, scoped, tag = 'scoped memory for gine_layer_light.1']
  %s0 = inlined_call_operand.vmem [shape: s32[2], index: 0, kind: input, shape index: {}]
  %s1 = inlined_call_operand.vmem [shape: s32[2], index: 1, kind: input, shape index: {}]
  %s2 = inlined_call_operand.<no memory space> [shape: f32[1,1], index: 2, kind: input, shape index: {}]
  %s3 = inlined_call_operand.vmem [shape: f32[256,128], index: 3, kind: input, shape index: {}]
  %s4 = inlined_call_operand.vmem [shape: s32[512,1], index: 4, kind: input, shape index: {}]
  %s5 = inlined_call_operand.vmem [shape: bf16[512,128], index: 5, kind: input, shape index: {}]
  %s6 = inlined_call_operand.vmem [shape: bf16[512,128], index: 6, kind: input, shape index: {}]
  %s7 = inlined_call_operand.vmem [shape: bf16[128,128], index: 7, kind: input, shape index: {}]
  %s8 = inlined_call_operand.vmem [shape: f32[1,128], index: 8, kind: input, shape index: {}]
  %s9 = inlined_call_operand.vmem [shape: bf16[128,128], index: 9, kind: input, shape index: {}]
  %s10 = inlined_call_operand.vmem [shape: f32[1,128], index: 10, kind: input, shape index: {}]
  %s11 = inlined_call_operand.vmem [shape: f32[256,128], index: 11, kind: output, shape index: {}]
  %s12 = sld [smem:[#allocation0]]
  $region81: #{gine_layer_light.1} parent=0
    _
  %s14 = ssub.s32 1, %s12
  %s15 = scalar_select 0, %s14, %s12
  %s16 = sshll.u32 %s0, 4
  %s17 = int_to_ptr.vmem [resolvable:$true] %s16
  %19 = dma.vmem_to_smem %s17, 16, [#allocation4], [#allocation3]
  %s20 = sshll.u32 %s1, 4
  %s21 = int_to_ptr.vmem [resolvable:$true] %s20
  %23 = dma.vmem_to_smem %s21, 16, [#allocation5], [#allocation3]
  %24 = sst [smem:[#allocation6]] %s2
  %25 = dma.done [#allocation3], 32
  %26 = sfence
  loop: start=0, step=1, limit=6
  $region2: #{gine_layer_light.1} parent=0 // loop_pre_header
    _
  $region3: #{gine_layer_light.1} parent=0 // loop_header
    %s28 = sphi 0, %s32
    %p29 = scmp.ge.s32.totalorder %s28, 6
    %s35 = sphi 0, %s47
    %s36 = sphi 0, %s43
    %s37 = sphi 0, %s35
    %s38 = sphi 0, %s36
    %s39 = sphi 0, %s37
    %s40 = sphi 0, %s38
    %s48 = sphi 0, %s48
    %s50 = sphi 0, %s48
    %s51 = sphi 0, %s50
    %s65 = sphi 0, %s51
    %s71 = sphi 0, %s73
    %s74 = sphi 0, %s71
    %s75 = sphi 0, %s74
    %s91 = sphi 0, %s75
    %s113 = sphi 0, %s115
    %s116 = sphi 0, %s113
    %s117 = sphi 0, %s116
    %s133 = sphi 0, %s117
    %s155 = sphi 0, %s157
    %s158 = sphi 0, %s155
    %s159 = sphi 0, %s158
    %s175 = sphi 0, %s159
    %s197 = sphi 0, %s199
    %s200 = sphi 0, %s197
    %s201 = sphi 0, %s200
    %s217 = sphi 0, %s201
    %s221 = sphi 0, %s221
    %s223 = sphi 0, %s221
    %s224 = sphi 0, %s223
    %s238 = sphi 0, %s224
    %s242 = sphi 0, %s242
    %s244 = sphi 0, %s242
    %s245 = sphi 0, %s244
    %s259 = sphi 0, %s245
    %s263 = sphi 0, %s263
    %s265 = sphi 0, %s263
    %s266 = sphi 0, %s265
    %s280 = sphi 0, %s266
    %s284 = sphi 0, %s284
    %s286 = sphi 0, %s284
    %s287 = sphi 0, %s286
    %s301 = sphi 0, %s287
    %s307 = sphi 0, %s309
    %s310 = sphi 0, %s307
    %s311 = sphi 0, %s310
    %s327 = sphi 0, %s311
  $region4: #{gine_layer_light.1} parent=0 // loop_header_branch
    %31 = sbr.rel (%p29) target = $region8
  $region5: #{gine_layer_light.1} parent=0 // loop_body
    %s33 = ssub.s32 %s28, 1
    %s34 = ssub.s32 %s28, 2
    %s41 = sadd.s32 1, %s36
    %p42 = scmp.ge.s32.totalorder %s41, 2
    %s43 = scalar_select %p42, 0, %s41
    %s44 = sadd.s32 1, %s35
    %s45 = scalar_select %p42, %s44, %s35
    %p46 = scmp.ge.s32.totalorder %s45, 2
    %s47 = scalar_select %p46, 0, %s45
    %s49 = sadd.s32 %s48, 1
    %p52 = scmp.eq.s32.totalorder %s28, 3
    %p53 = scmp.ne.s32.totalorder %s48, %s50
    %p54 = scmp.eq.s32.totalorder %s28, 0
    %p55 = por %p53, %p54
    %p56 = scmp.ne.s32.totalorder %s48, %s50
    %p57 = scmp.eq.s32.totalorder %s33, 3
    %p58 = por %p56, %p57
    %p59 = scmp.ne.s32.totalorder %s50, %s51
    %p60 = scmp.eq.s32.totalorder %s33, 0
    %p61 = por %p59, %p60
    %p62 = scmp.ne.s32.totalorder %s50, %s51
    %p63 = scmp.eq.s32.totalorder %s34, 3
    %p64 = por %p62, %p63
    %p66 = scmp.ne.s32.totalorder %s51, %s65
    %p67 = scmp.eq.s32.totalorder %s34, 0
    %p68 = por %p66, %p67
    %s69 = ssub.s32 %s35, %s47
    %p70 = scmp.eq.s32.totalorder %s69, 0
    %s72 = sadd.s32 %s71, 1
    %s73 = scalar_select %p70, %s71, %s72
    %p76 = pneg %p70
    %p77 = scmp.eq.s32.totalorder %s28, 3
    %p78 = por %p76, %p77
    %p79 = scmp.ne.s32.totalorder %s71, %s74
    %p80 = scmp.eq.s32.totalorder %s28, 0
    %p81 = por %p79, %p80
    %p82 = scmp.ne.s32.totalorder %s71, %s74
    %p83 = scmp.eq.s32.totalorder %s33, 3
    %p84 = por %p82, %p83
    %p85 = scmp.ne.s32.totalorder %s74, %s75
    %p86 = scmp.eq.s32.totalorder %s33, 0
    %p87 = por %p85, %p86
    %p88 = scmp.ne.s32.totalorder %s74, %s75
    %p89 = scmp.eq.s32.totalorder %s34, 3
    %p90 = por %p88, %p89
    %p92 = scmp.ne.s32.totalorder %s75, %s91
    %p93 = scmp.eq.s32.totalorder %s34, 0
    %p94 = por %p92, %p93
    %s95 = sld [smem:[#allocation4 + %s35]]
    %s96 = sld [smem:[#allocation5 + %s35]]
    %s97 = ssub.s32 %s96, 1
    %p98 = scmp.gt.s32.totalorder %s97, 0
    %s99 = scalar_select %p98, %s97, 0
    %p100 = scmp.lt.s32.totalorder %s36, %s99
    %s101 = scalar_select %p100, %s36, %s99
    %s102 = sadd.s32 %s95, %s101
    %s103 = sld [smem:[#allocation4 + %s47]]
    %s104 = sld [smem:[#allocation5 + %s47]]
    %s105 = ssub.s32 %s104, 1
    %p106 = scmp.gt.s32.totalorder %s105, 0
    %s107 = scalar_select %p106, %s105, 0
    %p108 = scmp.lt.s32.totalorder %s43, %s107
    %s109 = scalar_select %p108, %s43, %s107
    %s110 = sadd.s32 %s103, %s109
    %s111 = ssub.s32 %s102, %s110
    %p112 = scmp.eq.s32.totalorder %s111, 0
    %s114 = sadd.s32 %s113, 1
    %s115 = scalar_select %p112, %s113, %s114
    %p118 = pneg %p112
    %p119 = scmp.eq.s32.totalorder %s28, 3
    %p120 = por %p118, %p119
    %p121 = scmp.ne.s32.totalorder %s113, %s116
    %p122 = scmp.eq.s32.totalorder %s28, 0
    %p123 = por %p121, %p122
    %p124 = scmp.ne.s32.totalorder %s113, %s116
    %p125 = scmp.eq.s32.totalorder %s33, 3
    %p126 = por %p124, %p125
    %p127 = scmp.ne.s32.totalorder %s116, %s117
    %p128 = scmp.eq.s32.totalorder %s33, 0
    %p129 = por %p127, %p128
    %p130 = scmp.ne.s32.totalorder %s116, %s117
    %p131 = scmp.eq.s32.totalorder %s34, 3
    %p132 = por %p130, %p131
    %p134 = scmp.ne.s32.totalorder %s117, %s133
    %p135 = scmp.eq.s32.totalorder %s34, 0
    %p136 = por %p134, %p135
    %s137 = sld [smem:[#allocation4 + %s35]]
    %s138 = sld [smem:[#allocation5 + %s35]]
    %s139 = ssub.s32 %s138, 1
    %p140 = scmp.gt.s32.totalorder %s139, 0
    %s141 = scalar_select %p140, %s139, 0
    %p142 = scmp.lt.s32.totalorder %s36, %s141
    %s143 = scalar_select %p142, %s36, %s141
    %s144 = sadd.s32 %s137, %s143
    %s145 = sld [smem:[#allocation4 + %s47]]
    %s146 = sld [smem:[#allocation5 + %s47]]
    %s147 = ssub.s32 %s146, 1
    %p148 = scmp.gt.s32.totalorder %s147, 0
    %s149 = scalar_select %p148, %s147, 0
    %p150 = scmp.lt.s32.totalorder %s43, %s149
    %s151 = scalar_select %p150, %s43, %s149
    %s152 = sadd.s32 %s145, %s151
    %s153 = ssub.s32 %s144, %s152
    %p154 = scmp.eq.s32.totalorder %s153, 0
    %s156 = sadd.s32 %s155, 1
    %s157 = scalar_select %p154, %s155, %s156
    %p160 = pneg %p154
    %p161 = scmp.eq.s32.totalorder %s28, 3
    %p162 = por %p160, %p161
    %p163 = scmp.ne.s32.totalorder %s155, %s158
    %p164 = scmp.eq.s32.totalorder %s28, 0
    %p165 = por %p163, %p164
    %p166 = scmp.ne.s32.totalorder %s155, %s158
    %p167 = scmp.eq.s32.totalorder %s33, 3
    %p168 = por %p166, %p167
    %p169 = scmp.ne.s32.totalorder %s158, %s159
    %p170 = scmp.eq.s32.totalorder %s33, 0
    %p171 = por %p169, %p170
    %p172 = scmp.ne.s32.totalorder %s158, %s159
    %p173 = scmp.eq.s32.totalorder %s34, 3
    %p174 = por %p172, %p173
    %p176 = scmp.ne.s32.totalorder %s159, %s175
    %p177 = scmp.eq.s32.totalorder %s34, 0
    %p178 = por %p176, %p177
    %s179 = sld [smem:[#allocation4 + %s35]]
    %s180 = sld [smem:[#allocation5 + %s35]]
    %s181 = ssub.s32 %s180, 1
    %p182 = scmp.gt.s32.totalorder %s181, 0
    %s183 = scalar_select %p182, %s181, 0
    %p184 = scmp.lt.s32.totalorder %s36, %s183
    %s185 = scalar_select %p184, %s36, %s183
    %s186 = sadd.s32 %s179, %s185
    %s187 = sld [smem:[#allocation4 + %s47]]
    %s188 = sld [smem:[#allocation5 + %s47]]
    %s189 = ssub.s32 %s188, 1
    %p190 = scmp.gt.s32.totalorder %s189, 0
    %s191 = scalar_select %p190, %s189, 0
    %p192 = scmp.lt.s32.totalorder %s43, %s191
    %s193 = scalar_select %p192, %s43, %s191
    %s194 = sadd.s32 %s187, %s193
    %s195 = ssub.s32 %s186, %s194
    %p196 = scmp.eq.s32.totalorder %s195, 0
    %s198 = sadd.s32 %s197, 1
    %s199 = scalar_select %p196, %s197, %s198
    %p202 = pneg %p196
    %p203 = scmp.eq.s32.totalorder %s28, 3
    %p204 = por %p202, %p203
    %p205 = scmp.ne.s32.totalorder %s197, %s200
    %p206 = scmp.eq.s32.totalorder %s28, 0
    %p207 = por %p205, %p206
    %p208 = scmp.ne.s32.totalorder %s197, %s200
    %p209 = scmp.eq.s32.totalorder %s33, 3
    %p210 = por %p208, %p209
    %p211 = scmp.ne.s32.totalorder %s200, %s201
    %p212 = scmp.eq.s32.totalorder %s33, 0
    %p213 = por %p211, %p212
    %p214 = scmp.ne.s32.totalorder %s200, %s201
    %p215 = scmp.eq.s32.totalorder %s34, 3
    %p216 = por %p214, %p215
    %p218 = scmp.ne.s32.totalorder %s201, %s217
    %p219 = scmp.eq.s32.totalorder %s34, 0
    %p220 = por %p218, %p219
    %s222 = sadd.s32 %s221, 1
    %p225 = scmp.eq.s32.totalorder %s28, 3
    %p226 = scmp.ne.s32.totalorder %s221, %s223
    %p227 = scmp.eq.s32.totalorder %s28, 0
    %p228 = por %p226, %p227
    %p229 = scmp.ne.s32.totalorder %s221, %s223
    %p230 = scmp.eq.s32.totalorder %s33, 3
    %p231 = por %p229, %p230
    %p232 = scmp.ne.s32.totalorder %s223, %s224
    %p233 = scmp.eq.s32.totalorder %s33, 0
    %p234 = por %p232, %p233
    %p235 = scmp.ne.s32.totalorder %s223, %s224
    %p236 = scmp.eq.s32.totalorder %s34, 3
    %p237 = por %p235, %p236
    %p239 = scmp.ne.s32.totalorder %s224, %s238
    %p240 = scmp.eq.s32.totalorder %s34, 0
    %p241 = por %p239, %p240
    %s243 = sadd.s32 %s242, 1
    %p246 = scmp.eq.s32.totalorder %s28, 3
    %p247 = scmp.ne.s32.totalorder %s242, %s244
    %p248 = scmp.eq.s32.totalorder %s28, 0
    %p249 = por %p247, %p248
    %p250 = scmp.ne.s32.totalorder %s242, %s244
    %p251 = scmp.eq.s32.totalorder %s33, 3
    %p252 = por %p250, %p251
    %p253 = scmp.ne.s32.totalorder %s244, %s245
    %p254 = scmp.eq.s32.totalorder %s33, 0
    %p255 = por %p253, %p254
    %p256 = scmp.ne.s32.totalorder %s244, %s245
    %p257 = scmp.eq.s32.totalorder %s34, 3
    %p258 = por %p256, %p257
    %p260 = scmp.ne.s32.totalorder %s245, %s259
    %p261 = scmp.eq.s32.totalorder %s34, 0
    %p262 = por %p260, %p261
    %s264 = sadd.s32 %s263, 1
    %p267 = scmp.eq.s32.totalorder %s28, 3
    %p268 = scmp.ne.s32.totalorder %s263, %s265
    %p269 = scmp.eq.s32.totalorder %s28, 0
    %p270 = por %p268, %p269
    %p271 = scmp.ne.s32.totalorder %s263, %s265
    %p272 = scmp.eq.s32.totalorder %s33, 3
    %p273 = por %p271, %p272
    %p274 = scmp.ne.s32.totalorder %s265, %s266
    %p275 = scmp.eq.s32.totalorder %s33, 0
    %p276 = por %p274, %p275
    %p277 = scmp.ne.s32.totalorder %s265, %s266
    %p278 = scmp.eq.s32.totalorder %s34, 3
    %p279 = por %p277, %p278
    %p281 = scmp.ne.s32.totalorder %s266, %s280
    %p282 = scmp.eq.s32.totalorder %s34, 0
    %p283 = por %p281, %p282
    %s285 = sadd.s32 %s284, 1
    %p288 = scmp.eq.s32.totalorder %s28, 3
    %p289 = scmp.ne.s32.totalorder %s284, %s286
    %p290 = scmp.eq.s32.totalorder %s28, 0
    %p291 = por %p289, %p290
    %p292 = scmp.ne.s32.totalorder %s284, %s286
    %p293 = scmp.eq.s32.totalorder %s33, 3
    %p294 = por %p292, %p293
    %p295 = scmp.ne.s32.totalorder %s286, %s287
    %p296 = scmp.eq.s32.totalorder %s33, 0
    %p297 = por %p295, %p296
    %p298 = scmp.ne.s32.totalorder %s286, %s287
    %p299 = scmp.eq.s32.totalorder %s34, 3
    %p300 = por %p298, %p299
    %p302 = scmp.ne.s32.totalorder %s287, %s301
    %p303 = scmp.eq.s32.totalorder %s34, 0
    %p304 = por %p302, %p303
    %s305 = ssub.s32 %s35, %s47
    %p306 = scmp.eq.s32.totalorder %s305, 0
    %s308 = sadd.s32 %s307, 1
    %s309 = scalar_select %p306, %s307, %s308
    %p312 = pneg %p306
    %p313 = scmp.eq.s32.totalorder %s28, 3
    %p314 = por %p312, %p313
    %p315 = scmp.ne.s32.totalorder %s307, %s310
    %p316 = scmp.eq.s32.totalorder %s28, 0
    %p317 = por %p315, %p316
    %p318 = scmp.ne.s32.totalorder %s307, %s310
    %p319 = scmp.eq.s32.totalorder %s33, 3
    %p320 = por %p318, %p319
    %p321 = scmp.ne.s32.totalorder %s310, %s311
    %p322 = scmp.eq.s32.totalorder %s33, 0
    %p323 = por %p321, %p322
    %p324 = scmp.ne.s32.totalorder %s310, %s311
    %p325 = scmp.eq.s32.totalorder %s34, 3
    %p326 = por %p324, %p325
    %p328 = scmp.ne.s32.totalorder %s311, %s327
    %p329 = scmp.eq.s32.totalorder %s34, 0
    %p330 = por %p328, %p329
    %p331 = scmp.le.s32.totalorder 1, %s28
    %p332 = scmp.lt.s32.totalorder %s28, 5
    %p333 = pnand %p331, %p332
    %p334 = pneg %p333
    // Predicated region
    $region9: #{gine_layer_light.1} parent=5 // pred_check
      _
    $region10: #{gine_layer_light.1} parent=5 // pred_check_branch
      %336 = sbr.rel (%p333) target = $region12
    $region11: #{gine_layer_light.1} parent=5 // pred_region
      %s337 = ssub.s32 %s28, 1
      // Predicated region
      $region13: #{gine_layer_light.1} parent=11 // pred_check
        %p338 = pneg %p61
      $region14: #{gine_layer_light.1} parent=11 // pred_check_branch
        %340 = sbr.rel (%p338) target = $region16
      $region15: #{gine_layer_light.1} parent=11 // pred_region
        _
      $region16: #{gine_layer_light.1} parent=11 // pred_fallthru
        _
      // Predicated region
      $region17: #{gine_layer_light.1} parent=11 // pred_check
        %p341 = pneg %p234
      $region18: #{gine_layer_light.1} parent=11 // pred_check_branch
        %343 = sbr.rel (%p341) target = $region20
      $region19: #{gine_layer_light.1} parent=11 // pred_region
        _
      $region20: #{gine_layer_light.1} parent=11 // pred_fallthru
        _
      // Predicated region
      $region21: #{gine_layer_light.1} parent=11 // pred_check
        %p344 = pneg %p255
      $region22: #{gine_layer_light.1} parent=11 // pred_check_branch
        %346 = sbr.rel (%p344) target = $region24
      $region23: #{gine_layer_light.1} parent=11 // pred_region
        _
      $region24: #{gine_layer_light.1} parent=11 // pred_fallthru
        _
      // Predicated region
      $region25: #{gine_layer_light.1} parent=11 // pred_check
        %p347 = pneg %p276
      $region26: #{gine_layer_light.1} parent=11 // pred_check_branch
        %349 = sbr.rel (%p347) target = $region28
      $region27: #{gine_layer_light.1} parent=11 // pred_region
        _
      $region28: #{gine_layer_light.1} parent=11 // pred_fallthru
        _
      // Predicated region
      $region29: #{gine_layer_light.1} parent=11 // pred_check
        %p350 = pneg %p297
      $region30: #{gine_layer_light.1} parent=11 // pred_check_branch
        %352 = sbr.rel (%p350) target = $region32
      $region31: #{gine_layer_light.1} parent=11 // pred_region
        _
      $region32: #{gine_layer_light.1} parent=11 // pred_fallthru
        _
    $region12: #{gine_layer_light.1} parent=5 // pred_fallthru
      _
    %p353 = scmp.lt.s32.totalorder %s28, 4
    // Predicated region
    $region33: #{gine_layer_light.1} parent=5 // pred_check
      %p354 = pneg %p353
    $region34: #{gine_layer_light.1} parent=5 // pred_check_branch
      %356 = sbr.rel (%p354) target = $region36
    $region35: #{gine_layer_light.1} parent=5 // pred_region
      // Predicated region
      $region37: #{gine_layer_light.1} parent=35 // pred_check
        %p357 = pneg %p81
      $region38: #{gine_layer_light.1} parent=35 // pred_check_branch
        %359 = sbr.rel (%p357) target = $region40
      $region39: #{gine_layer_light.1} parent=35 // pred_region
        %s360 = smul.u32 16, %s35
        %p361 = scmp.lt.s32.totalorder %s360, 31
        %s362 = scalar_select %p361, %s360, 31
        %s363 = smul.addr %s362, 8
        %s364 = scalar_lea.vmem %s3, %s363
        %s365 = smul.u32 16, %s35
      $region40: #{gine_layer_light.1} parent=35 // pred_fallthru
        _
      // Predicated region
      $region41: #{gine_layer_light.1} parent=35 // pred_check
        %p366 = pneg %p123
      $region42: #{gine_layer_light.1} parent=35 // pred_check_branch
        %368 = sbr.rel (%p366) target = $region44
      $region43: #{gine_layer_light.1} parent=35 // pred_region
        %s369 = sld [smem:[#allocation4 + %s35]]
        %s370 = sld [smem:[#allocation5 + %s35]]
        %s371 = ssub.s32 %s370, 1
        %p372 = scmp.gt.s32.totalorder %s371, 0
        %s373 = scalar_select %p372, %s371, 0
        %p374 = scmp.lt.s32.totalorder %s36, %s373
        %s375 = scalar_select %p374, %s36, %s373
        %s376 = sadd.s32 %s369, %s375
        %s377 = smul.u32 32, %s376
        %p378 = scmp.lt.s32.totalorder %s377, 63
        %s379 = scalar_select %p378, %s377, 63
        %s380 = smul.addr %s379, 8
        %s381 = scalar_lea.vmem %s4, %s380
        %s382 = sld [smem:[#allocation4 + %s35]]
        %s383 = sld [smem:[#allocation5 + %s35]]
        %s384 = ssub.s32 %s383, 1
        %p385 = scmp.gt.s32.totalorder %s384, 0
        %s386 = scalar_select %p385, %s384, 0
        %p387 = scmp.lt.s32.totalorder %s36, %s386
        %s388 = scalar_select %p387, %s36, %s386
        %s389 = sadd.s32 %s382, %s388
        %s390 = smul.u32 32, %s389
      $region44: #{gine_layer_light.1} parent=35 // pred_fallthru
        _
      // Predicated region
      $region45: #{gine_layer_light.1} parent=35 // pred_check
        %p391 = pneg %p165
      $region46: #{gine_layer_light.1} parent=35 // pred_check_branch
        %393 = sbr.rel (%p391) target = $region48
      $region47: #{gine_layer_light.1} parent=35 // pred_region
        %s394 = sld [smem:[#allocation4 + %s35]]
        %s395 = sld [smem:[#allocation5 + %s35]]
        %s396 = ssub.s32 %s395, 1
        %p397 = scmp.gt.s32.totalorder %s396, 0
        %s398 = scalar_select %p397, %s396, 0
        %p399 = scmp.lt.s32.totalorder %s36, %s398
        %s400 = scalar_select %p399, %s36, %s398
        %s401 = sadd.s32 %s394, %s400
        %s402 = smul.u32 32, %s401
        %p403 = scmp.lt.s32.totalorder %s402, 63
        %s404 = scalar_select %p403, %s402, 63
        %s405 = smul.addr %s404, 4
        %s406 = scalar_lea.vmem %s5, %s405
        %s407 = sld [smem:[#allocation4 + %s35]]
        %s408 = sld [smem:[#allocation5 + %s35]]
        %s409 = ssub.s32 %s408, 1
        %p410 = scmp.gt.s32.totalorder %s409, 0
        %s411 = scalar_select %p410, %s409, 0
        %p412 = scmp.lt.s32.totalorder %s36, %s411
        %s413 = scalar_select %p412, %s36, %s411
        %s414 = sadd.s32 %s407, %s413
        %s415 = smul.u32 32, %s414
      $region48: #{gine_layer_light.1} parent=35 // pred_fallthru
        _
      // Predicated region
      $region49: #{gine_layer_light.1} parent=35 // pred_check
        %p416 = pneg %p207
      $region50: #{gine_layer_light.1} parent=35 // pred_check_branch
        %418 = sbr.rel (%p416) target = $region52
      $region51: #{gine_layer_light.1} parent=35 // pred_region
        %s419 = sld [smem:[#allocation4 + %s35]]
        %s420 = sld [smem:[#allocation5 + %s35]]
        %s421 = ssub.s32 %s420, 1
        %p422 = scmp.gt.s32.totalorder %s421, 0
        %s423 = scalar_select %p422, %s421, 0
        %p424 = scmp.lt.s32.totalorder %s36, %s423
        %s425 = scalar_select %p424, %s36, %s423
        %s426 = sadd.s32 %s419, %s425
        %s427 = smul.u32 32, %s426
        %p428 = scmp.lt.s32.totalorder %s427, 63
        %s429 = scalar_select %p428, %s427, 63
        %s430 = smul.addr %s429, 4
        %s431 = scalar_lea.vmem %s6, %s430
        %s432 = sld [smem:[#allocation4 + %s35]]
        %s433 = sld [smem:[#allocation5 + %s35]]
        %s434 = ssub.s32 %s433, 1
        %p435 = scmp.gt.s32.totalorder %s434, 0
        %s436 = scalar_select %p435, %s434, 0
        %p437 = scmp.lt.s32.totalorder %s36, %s436
        %s438 = scalar_select %p437, %s36, %s436
        %s439 = sadd.s32 %s432, %s438
        %s440 = smul.u32 32, %s439
      $region52: #{gine_layer_light.1} parent=35 // pred_fallthru
        _
    $region36: #{gine_layer_light.1} parent=5 // pred_fallthru
      _
    %p441 = scmp.le.s32.totalorder 1, %s28
    %p442 = scmp.lt.s32.totalorder %s28, 5
    %p443 = pnand %p441, %p442
    %p444 = pneg %p443
    // Predicated region
    $region53: #{gine_layer_light.1} parent=5 // pred_check
      _
    $region54: #{gine_layer_light.1} parent=5 // pred_check_branch
      %446 = sbr.rel (%p443) target = $region56
    $region55: #{gine_layer_light.1} parent=5 // pred_region
      %s447 = ssub.s32 %s28, 1
      %p448 = pneg %p61
      %p449 = pneg %p58
      %s450 = smul.u32 16, %s37
      %p451 = scmp.lt.s32.totalorder %s450, 31
      %s452 = scalar_select %p451, %s450, 31
      %s453 = smul.addr %s452, 8
      %s454 = scalar_lea.vmem %s3, %s453
      %p455 = pneg %p87
      %p456 = pneg %p84
      %s457 = sld [smem:[#allocation4 + %s37]]
      %s458 = sld [smem:[#allocation5 + %s37]]
      %s459 = ssub.s32 %s458, 1
      %p460 = scmp.gt.s32.totalorder %s459, 0
      %s461 = scalar_select %p460, %s459, 0
      %p462 = scmp.lt.s32.totalorder %s38, %s461
      %s463 = scalar_select %p462, %s38, %s461
      %s464 = sadd.s32 %s457, %s463
      %s465 = smul.u32 32, %s464
      %p466 = scmp.lt.s32.totalorder %s465, 63
      %s467 = scalar_select %p466, %s465, 63
      %s468 = smul.addr %s467, 8
      %s469 = scalar_lea.vmem %s4, %s468
      %p470 = pneg %p129
      %p471 = pneg %p126
      %s472 = sld [smem:[#allocation4 + %s37]]
      %s473 = sld [smem:[#allocation5 + %s37]]
      %s474 = ssub.s32 %s473, 1
      %p475 = scmp.gt.s32.totalorder %s474, 0
      %s476 = scalar_select %p475, %s474, 0
      %p477 = scmp.lt.s32.totalorder %s38, %s476
      %s478 = scalar_select %p477, %s38, %s476
      %s479 = sadd.s32 %s472, %s478
      %s480 = smul.u32 32, %s479
      %p481 = scmp.lt.s32.totalorder %s480, 63
      %s482 = scalar_select %p481, %s480, 63
      %s483 = smul.addr %s482, 4
      %s484 = scalar_lea.vmem %s5, %s483
      %p485 = pneg %p171
      %p486 = pneg %p168
      %s487 = sld [smem:[#allocation4 + %s37]]
      %s488 = sld [smem:[#allocation5 + %s37]]
      %s489 = ssub.s32 %s488, 1
      %p490 = scmp.gt.s32.totalorder %s489, 0
      %s491 = scalar_select %p490, %s489, 0
      %p492 = scmp.lt.s32.totalorder %s38, %s491
      %s493 = scalar_select %p492, %s38, %s491
      %s494 = sadd.s32 %s487, %s493
      %s495 = smul.u32 32, %s494
      %p496 = scmp.lt.s32.totalorder %s495, 63
      %s497 = scalar_select %p496, %s495, 63
      %s498 = smul.addr %s497, 4
      %s499 = scalar_lea.vmem %s6, %s498
      %p500 = pneg %p213
      %p501 = pneg %p210
      %p502 = pneg %p234
      %p503 = pneg %p231
      %p504 = pneg %p255
      %p505 = pneg %p252
      %p506 = pneg %p276
      %p507 = pneg %p273
      %p508 = pneg %p297
      %p509 = pneg %p294
      %p510 = pneg %p323
      %p511 = pneg %p320
      %s512 = smul.u32 16, %s37
      %p513 = scmp.lt.s32.totalorder %s512, 31
      %s514 = scalar_select %p513, %s512, 31
      %s515 = smul.addr %s514, 8
      %s516 = scalar_lea.vmem %s11, %s515
      %s517 = smul.u32 16, %s37
      %p518 = scmp.lt.s32.totalorder %s517, 31
      %s519 = scalar_select %p518, %s517, 31
      %s520 = smul.addr %s519, 8
      %s521 = scalar_lea.vmem %s3, %s520
      %s522 = smul.u32 16, %s37
      %s523 = sld [smem:[#allocation4 + %s37]]
      %s524 = sld [smem:[#allocation5 + %s37]]
      %s525 = ssub.s32 %s524, 1
      %p526 = scmp.gt.s32.totalorder %s525, 0
      %s527 = scalar_select %p526, %s525, 0
      %p528 = scmp.lt.s32.totalorder %s38, %s527
      %s529 = scalar_select %p528, %s38, %s527
      %s530 = sadd.s32 %s523, %s529
      %s531 = smul.u32 32, %s530
      %p532 = scmp.lt.s32.totalorder %s531, 63
      %s533 = scalar_select %p532, %s531, 63
      %s534 = smul.addr %s533, 8
      %s535 = scalar_lea.vmem %s4, %s534
      %s536 = sld [smem:[#allocation4 + %s37]]
      %s537 = sld [smem:[#allocation5 + %s37]]
      %s538 = ssub.s32 %s537, 1
      %p539 = scmp.gt.s32.totalorder %s538, 0
      %s540 = scalar_select %p539, %s538, 0
      %p541 = scmp.lt.s32.totalorder %s38, %s540
      %s542 = scalar_select %p541, %s38, %s540
      %s543 = sadd.s32 %s536, %s542
      %s544 = smul.u32 32, %s543
      %s545 = sld [smem:[#allocation4 + %s37]]
      %s546 = sld [smem:[#allocation5 + %s37]]
      %s547 = ssub.s32 %s546, 1
      %p548 = scmp.gt.s32.totalorder %s547, 0
      %s549 = scalar_select %p548, %s547, 0
      %p550 = scmp.lt.s32.totalorder %s38, %s549
      %s551 = scalar_select %p550, %s38, %s549
      %s552 = sadd.s32 %s545, %s551
      %s553 = smul.u32 32, %s552
      %p554 = scmp.lt.s32.totalorder %s553, 63
      %s555 = scalar_select %p554, %s553, 63
      %s556 = smul.addr %s555, 4
      %s557 = scalar_lea.vmem %s5, %s556
      %s558 = sld [smem:[#allocation4 + %s37]]
      %s559 = sld [smem:[#allocation5 + %s37]]
      %s560 = ssub.s32 %s559, 1
      %p561 = scmp.gt.s32.totalorder %s560, 0
      %s562 = scalar_select %p561, %s560, 0
      %p563 = scmp.lt.s32.totalorder %s38, %s562
      %s564 = scalar_select %p563, %s38, %s562
      %s565 = sadd.s32 %s558, %s564
      %s566 = smul.u32 32, %s565
      %s567 = sld [smem:[#allocation4 + %s37]]
      %s568 = sld [smem:[#allocation5 + %s37]]
      %s569 = ssub.s32 %s568, 1
      %p570 = scmp.gt.s32.totalorder %s569, 0
      %s571 = scalar_select %p570, %s569, 0
      %p572 = scmp.lt.s32.totalorder %s38, %s571
      %s573 = scalar_select %p572, %s38, %s571
      %s574 = sadd.s32 %s567, %s573
      %s575 = smul.u32 32, %s574
      %p576 = scmp.lt.s32.totalorder %s575, 63
      %s577 = scalar_select %p576, %s575, 63
      %s578 = smul.addr %s577, 4
      %s579 = scalar_lea.vmem %s6, %s578
      %s580 = sld [smem:[#allocation4 + %s37]]
      %s581 = sld [smem:[#allocation5 + %s37]]
      %s582 = ssub.s32 %s581, 1
      %p583 = scmp.gt.s32.totalorder %s582, 0
      %s584 = scalar_select %p583, %s582, 0
      %p585 = scmp.lt.s32.totalorder %s38, %s584
      %s586 = scalar_select %p585, %s38, %s584
      %s587 = sadd.s32 %s580, %s586
      %s588 = smul.u32 32, %s587
      %s589 = smul.u32 16, %s37
      %p590 = scmp.lt.s32.totalorder %s589, 31
      %s591 = scalar_select %p590, %s589, 31
      %s592 = smul.addr %s591, 8
      %s593 = scalar_lea.vmem %s11, %s592
      %s594 = smul.u32 16, %s37
      %p596 = scmp.eq.s32.totalorder %s38, 0
      // Predicated region
      $region57: #{gine_layer_light.1} parent=55 // pred_check
        %p597 = pneg %p596
      $region58: #{gine_layer_light.1} parent=55 // pred_check_branch
        %599 = sbr.rel (%p597) target = $region60
      $region59: #{gine_layer_light.1} parent=55 // pred_region
        %600 = vst [vmem:[#allocation2] sm:$0xff] 0.0
        %601 = vst [vmem:[#allocation2 + $0x8] sm:$0xff] 0.0
        %602 = vst [vmem:[#allocation2 + $0x10] sm:$0xff] 0.0
        %603 = vst [vmem:[#allocation2 + $0x18] sm:$0xff] 0.0
        %604 = vst [vmem:[#allocation2 + $0x20] sm:$0xff] 0.0
        %605 = vst [vmem:[#allocation2 + $0x28] sm:$0xff] 0.0
        %606 = vst [vmem:[#allocation2 + $0x30] sm:$0xff] 0.0
        %607 = vst [vmem:[#allocation2 + $0x38] sm:$0xff] 0.0
        %608 = vst [vmem:[#allocation2 + $0x40] sm:$0xff] 0.0
        %609 = vst [vmem:[#allocation2 + $0x48] sm:$0xff] 0.0
        %610 = vst [vmem:[#allocation2 + $0x50] sm:$0xff] 0.0
        %611 = vst [vmem:[#allocation2 + $0x58] sm:$0xff] 0.0
        %612 = vst [vmem:[#allocation2 + $0x60] sm:$0xff] 0.0
        %613 = vst [vmem:[#allocation2 + $0x68] sm:$0xff] 0.0
        %614 = vst [vmem:[#allocation2 + $0x70] sm:$0xff] 0.0
        %615 = vst [vmem:[#allocation2 + $0x78] sm:$0xff] 0.0
      $region60: #{gine_layer_light.1} parent=55 // pred_fallthru
        _
      %s616 = sld [smem:[#allocation5 + %s37]]
      %p617 = scmp.lt.s32.totalorder %s38, %s616
      // Predicated region
      $region61: #{gine_layer_light.1} parent=55 // pred_check
        %p618 = pneg %p617
      $region62: #{gine_layer_light.1} parent=55 // pred_check_branch
        %620 = sbr.rel (%p618) target = $region64
      $region63: #{gine_layer_light.1} parent=55 // pred_region
        %v621 = vld [vmem:[%s557] sm:$0xf]
        %v622 = vld [vmem:[%s557 + $0x4] sm:$0xf]
        %v623 = vld [vmem:[%s557 + $0x8] sm:$0xf]
        %v624 = vld [vmem:[%s557 + $0xc] sm:$0xf]
        %v625 = vld [vmem:[%s557 + $0x10] sm:$0xf]
        %v626 = vld [vmem:[%s557 + $0x14] sm:$0xf]
        %v627 = vld [vmem:[%s557 + $0x18] sm:$0xf]
        %v628 = vld [vmem:[%s557 + $0x1c] sm:$0xf]
        %v629 = vld [vmem:[%s557 + $0x20] sm:$0xf]
        %v630 = vld [vmem:[%s557 + $0x24] sm:$0xf]
        %v631 = vld [vmem:[%s557 + $0x28] sm:$0xf]
        %v632 = vld [vmem:[%s557 + $0x2c] sm:$0xf]
        %v633 = vld [vmem:[%s557 + $0x30] sm:$0xf]
        %v634 = vld [vmem:[%s557 + $0x34] sm:$0xf]
        %v635 = vld [vmem:[%s557 + $0x38] sm:$0xf]
        %v636 = vld [vmem:[%s557 + $0x3c] sm:$0xf]
        %v637 = vld [vmem:[%s557 + $0x40] sm:$0xf]
        %v638 = vld [vmem:[%s557 + $0x44] sm:$0xf]
        %v639 = vld [vmem:[%s557 + $0x48] sm:$0xf]
        %v640 = vld [vmem:[%s557 + $0x4c] sm:$0xf]
        %v641 = vld [vmem:[%s557 + $0x50] sm:$0xf]
        %v642 = vld [vmem:[%s557 + $0x54] sm:$0xf]
        %v643 = vld [vmem:[%s557 + $0x58] sm:$0xf]
        %v644 = vld [vmem:[%s557 + $0x5c] sm:$0xf]
        %v645 = vld [vmem:[%s557 + $0x60] sm:$0xf]
        %v646 = vld [vmem:[%s557 + $0x64] sm:$0xf]
        %v647 = vld [vmem:[%s557 + $0x68] sm:$0xf]
        %v648 = vld [vmem:[%s557 + $0x6c] sm:$0xf]
        %v649 = vld [vmem:[%s557 + $0x70] sm:$0xf]
        %v650 = vld [vmem:[%s557 + $0x74] sm:$0xf]
        %v651 = vld [vmem:[%s557 + $0x78] sm:$0xf]
        %v652 = vld [vmem:[%s557 + $0x7c] sm:$0xf]
        %v653 = vld [vmem:[%s579] sm:$0xf]
        %v654 = vld [vmem:[%s579 + $0x4] sm:$0xf]
        %v655 = vld [vmem:[%s579 + $0x8] sm:$0xf]
        %v656 = vld [vmem:[%s579 + $0xc] sm:$0xf]
        %v657 = vld [vmem:[%s579 + $0x10] sm:$0xf]
        %v658 = vld [vmem:[%s579 + $0x14] sm:$0xf]
        %v659 = vld [vmem:[%s579 + $0x18] sm:$0xf]
        %v660 = vld [vmem:[%s579 + $0x1c] sm:$0xf]
        %v661 = vld [vmem:[%s579 + $0x20] sm:$0xf]
        %v662 = vld [vmem:[%s579 + $0x24] sm:$0xf]
        %v663 = vld [vmem:[%s579 + $0x28] sm:$0xf]
        %v664 = vld [vmem:[%s579 + $0x2c] sm:$0xf]
        %v665 = vld [vmem:[%s579 + $0x30] sm:$0xf]
        %v666 = vld [vmem:[%s579 + $0x34] sm:$0xf]
        %v667 = vld [vmem:[%s579 + $0x38] sm:$0xf]
        %v668 = vld [vmem:[%s579 + $0x3c] sm:$0xf]
        %v669 = vld [vmem:[%s579 + $0x40] sm:$0xf]
        %v670 = vld [vmem:[%s579 + $0x44] sm:$0xf]
        %v671 = vld [vmem:[%s579 + $0x48] sm:$0xf]
        %v672 = vld [vmem:[%s579 + $0x4c] sm:$0xf]
        %v673 = vld [vmem:[%s579 + $0x50] sm:$0xf]
        %v674 = vld [vmem:[%s579 + $0x54] sm:$0xf]
        %v675 = vld [vmem:[%s579 + $0x58] sm:$0xf]
        %v676 = vld [vmem:[%s579 + $0x5c] sm:$0xf]
        %v677 = vld [vmem:[%s579 + $0x60] sm:$0xf]
        %v678 = vld [vmem:[%s579 + $0x64] sm:$0xf]
        %v679 = vld [vmem:[%s579 + $0x68] sm:$0xf]
        %v680 = vld [vmem:[%s579 + $0x6c] sm:$0xf]
        %v681 = vld [vmem:[%s579 + $0x70] sm:$0xf]
        %v682 = vld [vmem:[%s579 + $0x74] sm:$0xf]
        %v683 = vld [vmem:[%s579 + $0x78] sm:$0xf]
        %v684 = vld [vmem:[%s579 + $0x7c] sm:$0xf]
        %v685 = vadd.bf16 %v621, %v653
        %v686 = vadd.bf16 %v622, %v654
        %v687 = vadd.bf16 %v623, %v655
        %v688 = vadd.bf16 %v624, %v656
        %v689 = vadd.bf16 %v625, %v657
        %v690 = vadd.bf16 %v626, %v658
        %v691 = vadd.bf16 %v627, %v659
        %v692 = vadd.bf16 %v628, %v660
        %v693 = vadd.bf16 %v629, %v661
        %v694 = vadd.bf16 %v630, %v662
        %v695 = vadd.bf16 %v631, %v663
        %v696 = vadd.bf16 %v632, %v664
        %v697 = vadd.bf16 %v633, %v665
        %v698 = vadd.bf16 %v634, %v666
        %v699 = vadd.bf16 %v635, %v667
        %v700 = vadd.bf16 %v636, %v668
        %v701 = vadd.bf16 %v637, %v669
        %v702 = vadd.bf16 %v638, %v670
        %v703 = vadd.bf16 %v639, %v671
        %v704 = vadd.bf16 %v640, %v672
        %v705 = vadd.bf16 %v641, %v673
        %v706 = vadd.bf16 %v642, %v674
        %v707 = vadd.bf16 %v643, %v675
        %v708 = vadd.bf16 %v644, %v676
        %v709 = vadd.bf16 %v645, %v677
        %v710 = vadd.bf16 %v646, %v678
        %v711 = vadd.bf16 %v647, %v679
        %v712 = vadd.bf16 %v648, %v680
        %v713 = vadd.bf16 %v649, %v681
        %v714 = vadd.bf16 %v650, %v682
        %v715 = vadd.bf16 %v651, %v683
        %v716 = vadd.bf16 %v652, %v684
        %v717 = vmax.bf16 %v685, 0
        %v718 = vmax.bf16 %v686, 0
        %v719 = vmax.bf16 %v687, 0
        %v720 = vmax.bf16 %v688, 0
        %v721 = vmax.bf16 %v689, 0
        %v722 = vmax.bf16 %v690, 0
        %v723 = vmax.bf16 %v691, 0
        %v724 = vmax.bf16 %v692, 0
        %v725 = vmax.bf16 %v693, 0
        %v726 = vmax.bf16 %v694, 0
        %v727 = vmax.bf16 %v695, 0
        %v728 = vmax.bf16 %v696, 0
        %v729 = vmax.bf16 %v697, 0
        %v730 = vmax.bf16 %v698, 0
        %v731 = vmax.bf16 %v699, 0
        %v732 = vmax.bf16 %v700, 0
        %v733 = vmax.bf16 %v701, 0
        %v734 = vmax.bf16 %v702, 0
        %v735 = vmax.bf16 %v703, 0
        %v736 = vmax.bf16 %v704, 0
        %v737 = vmax.bf16 %v705, 0
        %v738 = vmax.bf16 %v706, 0
        %v739 = vmax.bf16 %v707, 0
        %v740 = vmax.bf16 %v708, 0
        %v741 = vmax.bf16 %v709, 0
        %v742 = vmax.bf16 %v710, 0
        %v743 = vmax.bf16 %v711, 0
        %v744 = vmax.bf16 %v712, 0
        %v745 = vmax.bf16 %v713, 0
        %v746 = vmax.bf16 %v714, 0
        %v747 = vmax.bf16 %v715, 0
        %v748 = vmax.bf16 %v716, 0
        %v749 = vld [vmem:[%s535] sm:$0xff]
        %v750 = vld [vmem:[%s535 + $0x8] sm:$0xff]
        %v751 = vld [vmem:[%s535 + $0x10] sm:$0xff]
        %v752 = vld [vmem:[%s535 + $0x18] sm:$0xff]
        %v753 = vld [vmem:[%s535 + $0x20] sm:$0xff]
        %v754 = vld [vmem:[%s535 + $0x28] sm:$0xff]
        %v755 = vld [vmem:[%s535 + $0x30] sm:$0xff]
        %v756 = vld [vmem:[%s535 + $0x38] sm:$0xff]
        %v757 = vld [vmem:[%s535 + $0x40] sm:$0xff]
        %v758 = vld [vmem:[%s535 + $0x48] sm:$0xff]
        %v759 = vld [vmem:[%s535 + $0x50] sm:$0xff]
        %v760 = vld [vmem:[%s535 + $0x58] sm:$0xff]
        %v761 = vld [vmem:[%s535 + $0x60] sm:$0xff]
        %v762 = vld [vmem:[%s535 + $0x68] sm:$0xff]
        %v763 = vld [vmem:[%s535 + $0x70] sm:$0xff]
        %v764 = vld [vmem:[%s535 + $0x78] sm:$0xff]
        %v765 = vld [vmem:[%s535 + $0x80] sm:$0xff]
        %v766 = vld [vmem:[%s535 + $0x88] sm:$0xff]
        %v767 = vld [vmem:[%s535 + $0x90] sm:$0xff]
        %v768 = vld [vmem:[%s535 + $0x98] sm:$0xff]
        %v769 = vld [vmem:[%s535 + $0xa0] sm:$0xff]
        %v770 = vld [vmem:[%s535 + $0xa8] sm:$0xff]
        %v771 = vld [vmem:[%s535 + $0xb0] sm:$0xff]
        %v772 = vld [vmem:[%s535 + $0xb8] sm:$0xff]
        %v773 = vld [vmem:[%s535 + $0xc0] sm:$0xff]
        %v774 = vld [vmem:[%s535 + $0xc8] sm:$0xff]
        %v775 = vld [vmem:[%s535 + $0xd0] sm:$0xff]
        %v776 = vld [vmem:[%s535 + $0xd8] sm:$0xff]
        %v777 = vld [vmem:[%s535 + $0xe0] sm:$0xff]
        %v778 = vld [vmem:[%s535 + $0xe8] sm:$0xff]
        %v779 = vld [vmem:[%s535 + $0xf0] sm:$0xff]
        %v780 = vld [vmem:[%s535 + $0xf8] sm:$0xff]
        %s781 = smul.u32 %s37, 128
        %v782 = vstv %s781
        %v783 = vsub.s32 %v749, %v782
        %v784 = vsub.s32 %v750, %v782
        %v785 = vsub.s32 %v751, %v782
        %v786 = vsub.s32 %v752, %v782
        %v787 = vsub.s32 %v753, %v782
        %v788 = vsub.s32 %v754, %v782
        %v789 = vsub.s32 %v755, %v782
        %v790 = vsub.s32 %v756, %v782
        %v791 = vsub.s32 %v757, %v782
        %v792 = vsub.s32 %v758, %v782
        %v793 = vsub.s32 %v759, %v782
        %v794 = vsub.s32 %v760, %v782
        %v795 = vsub.s32 %v761, %v782
        %v796 = vsub.s32 %v762, %v782
        %v797 = vsub.s32 %v763, %v782
        %v798 = vsub.s32 %v764, %v782
        %v799 = vsub.s32 %v765, %v782
        %v800 = vsub.s32 %v766, %v782
        %v801 = vsub.s32 %v767, %v782
        %v802 = vsub.s32 %v768, %v782
        %v803 = vsub.s32 %v769, %v782
        %v804 = vsub.s32 %v770, %v782
        %v805 = vsub.s32 %v771, %v782
        %v806 = vsub.s32 %v772, %v782
        %v807 = vsub.s32 %v773, %v782
        %v808 = vsub.s32 %v774, %v782
        %v809 = vsub.s32 %v775, %v782
        %v810 = vsub.s32 %v776, %v782
        %v811 = vsub.s32 %v777, %v782
        %v812 = vsub.s32 %v778, %v782
        %v813 = vsub.s32 %v779, %v782
        %v814 = vsub.s32 %v780, %v782
        %v815 = vlaneseq
        %v816 = vand.u32 %v815, 127
        %817 = vset.pattern.permute.xlu0 0
        %818 = vperm.xlu0 %817, %v783
        %v819 = vpop.permute.xlu0 %818
        %820 = vset.pattern.permute.xlu0 0
        %821 = vperm.xlu0 %820, %v784
        %v822 = vpop.permute.xlu0 %821
        %823 = vset.pattern.permute.xlu0 0
        %824 = vperm.xlu0 %823, %v785
        %v825 = vpop.permute.xlu0 %824
        %826 = vset.pattern.permute.xlu0 0
        %827 = vperm.xlu0 %826, %v786
        %v828 = vpop.permute.xlu0 %827
        %829 = vset.pattern.permute.xlu0 0
        %830 = vperm.xlu0 %829, %v787
        %v831 = vpop.permute.xlu0 %830
        %832 = vset.pattern.permute.xlu0 0
        %833 = vperm.xlu0 %832, %v788
        %v834 = vpop.permute.xlu0 %833
        %835 = vset.pattern.permute.xlu0 0
        %836 = vperm.xlu0 %835, %v789
        %v837 = vpop.permute.xlu0 %836
        %838 = vset.pattern.permute.xlu0 0
        %839 = vperm.xlu0 %838, %v790
        %v840 = vpop.permute.xlu0 %839
        %841 = vset.pattern.permute.xlu0 0
        %842 = vperm.xlu0 %841, %v791
        %v843 = vpop.permute.xlu0 %842
        %844 = vset.pattern.permute.xlu0 0
        %845 = vperm.xlu0 %844, %v792
        %v846 = vpop.permute.xlu0 %845
        %847 = vset.pattern.permute.xlu0 0
        %848 = vperm.xlu0 %847, %v793
        %v849 = vpop.permute.xlu0 %848
        %850 = vset.pattern.permute.xlu0 0
        %851 = vperm.xlu0 %850, %v794
        %v852 = vpop.permute.xlu0 %851
        %853 = vset.pattern.permute.xlu0 0
        %854 = vperm.xlu0 %853, %v795
        %v855 = vpop.permute.xlu0 %854
        %856 = vset.pattern.permute.xlu0 0
        %857 = vperm.xlu0 %856, %v796
        %v858 = vpop.permute.xlu0 %857
        %859 = vset.pattern.permute.xlu0 0
        %860 = vperm.xlu0 %859, %v797
        %v861 = vpop.permute.xlu0 %860
        %862 = vset.pattern.permute.xlu0 0
        %863 = vperm.xlu0 %862, %v798
        %v864 = vpop.permute.xlu0 %863
        %865 = vset.pattern.permute.xlu0 0
        %866 = vperm.xlu0 %865, %v799
        %v867 = vpop.permute.xlu0 %866
        %868 = vset.pattern.permute.xlu0 0
        %869 = vperm.xlu0 %868, %v800
        %v870 = vpop.permute.xlu0 %869
        %871 = vset.pattern.permute.xlu0 0
        %872 = vperm.xlu0 %871, %v801
        %v873 = vpop.permute.xlu0 %872
        %874 = vset.pattern.permute.xlu0 0
        %875 = vperm.xlu0 %874, %v802
        %v876 = vpop.permute.xlu0 %875
        %877 = vset.pattern.permute.xlu0 0
        %878 = vperm.xlu0 %877, %v803
        %v879 = vpop.permute.xlu0 %878
        %880 = vset.pattern.permute.xlu0 0
        %881 = vperm.xlu0 %880, %v804
        %v882 = vpop.permute.xlu0 %881
        %883 = vset.pattern.permute.xlu0 0
        %884 = vperm.xlu0 %883, %v805
        %v885 = vpop.permute.xlu0 %884
        %886 = vset.pattern.permute.xlu0 0
        %887 = vperm.xlu0 %886, %v806
        %v888 = vpop.permute.xlu0 %887
        %889 = vset.pattern.permute.xlu0 0
        %890 = vperm.xlu0 %889, %v807
        %v891 = vpop.permute.xlu0 %890
        %892 = vset.pattern.permute.xlu0 0
        %893 = vperm.xlu0 %892, %v808
        %v894 = vpop.permute.xlu0 %893
        %895 = vset.pattern.permute.xlu0 0
        %896 = vperm.xlu0 %895, %v809
        %v897 = vpop.permute.xlu0 %896
        %898 = vset.pattern.permute.xlu0 0
        %899 = vperm.xlu0 %898, %v810
        %v900 = vpop.permute.xlu0 %899
        %901 = vset.pattern.permute.xlu0 0
        %902 = vperm.xlu0 %901, %v811
        %v903 = vpop.permute.xlu0 %902
        %904 = vset.pattern.permute.xlu0 0
        %905 = vperm.xlu0 %904, %v812
        %v906 = vpop.permute.xlu0 %905
        %907 = vset.pattern.permute.xlu0 0
        %908 = vperm.xlu0 %907, %v813
        %v909 = vpop.permute.xlu0 %908
        %910 = vset.pattern.permute.xlu0 0
        %911 = vperm.xlu0 %910, %v814
        %v912 = vpop.permute.xlu0 %911
        %vm913 = vcmp.eq.s32.totalorder %v819, %v816
        %vm914 = vcmp.eq.s32.totalorder %v822, %v816
        %vm915 = vcmp.eq.s32.totalorder %v825, %v816
        %vm916 = vcmp.eq.s32.totalorder %v828, %v816
        %vm917 = vcmp.eq.s32.totalorder %v831, %v816
        %vm918 = vcmp.eq.s32.totalorder %v834, %v816
        %vm919 = vcmp.eq.s32.totalorder %v837, %v816
        %vm920 = vcmp.eq.s32.totalorder %v840, %v816
        %vm921 = vcmp.eq.s32.totalorder %v843, %v816
        %vm922 = vcmp.eq.s32.totalorder %v846, %v816
        %vm923 = vcmp.eq.s32.totalorder %v849, %v816
        %vm924 = vcmp.eq.s32.totalorder %v852, %v816
        %vm925 = vcmp.eq.s32.totalorder %v855, %v816
        %vm926 = vcmp.eq.s32.totalorder %v858, %v816
        %vm927 = vcmp.eq.s32.totalorder %v861, %v816
        %vm928 = vcmp.eq.s32.totalorder %v864, %v816
        %vm929 = vcmp.eq.s32.totalorder %v867, %v816
        %vm930 = vcmp.eq.s32.totalorder %v870, %v816
        %vm931 = vcmp.eq.s32.totalorder %v873, %v816
        %vm932 = vcmp.eq.s32.totalorder %v876, %v816
        %vm933 = vcmp.eq.s32.totalorder %v879, %v816
        %vm934 = vcmp.eq.s32.totalorder %v882, %v816
        %vm935 = vcmp.eq.s32.totalorder %v885, %v816
        %vm936 = vcmp.eq.s32.totalorder %v888, %v816
        %vm937 = vcmp.eq.s32.totalorder %v891, %v816
        %vm938 = vcmp.eq.s32.totalorder %v894, %v816
        %vm939 = vcmp.eq.s32.totalorder %v897, %v816
        %vm940 = vcmp.eq.s32.totalorder %v900, %v816
        %vm941 = vcmp.eq.s32.totalorder %v903, %v816
        %vm942 = vcmp.eq.s32.totalorder %v906, %v816
        %vm943 = vcmp.eq.s32.totalorder %v909, %v816
        %vm944 = vcmp.eq.s32.totalorder %v912, %v816
        %v945 = vsel %vm913, 1, 0
        %v946 = vsel %vm914, 1, 0
        %v947 = vsel %vm915, 1, 0
        %v948 = vsel %vm916, 1, 0
        %v949 = vsel %vm917, 1, 0
        %v950 = vsel %vm918, 1, 0
        %v951 = vsel %vm919, 1, 0
        %v952 = vsel %vm920, 1, 0
        %v953 = vsel %vm921, 1, 0
        %v954 = vsel %vm922, 1, 0
        %v955 = vsel %vm923, 1, 0
        %v956 = vsel %vm924, 1, 0
        %v957 = vsel %vm925, 1, 0
        %v958 = vsel %vm926, 1, 0
        %v959 = vsel %vm927, 1, 0
        %v960 = vsel %vm928, 1, 0
        %v961 = vsel %vm929, 1, 0
        %v962 = vsel %vm930, 1, 0
        %v963 = vsel %vm931, 1, 0
        %v964 = vsel %vm932, 1, 0
        %v965 = vsel %vm933, 1, 0
        %v966 = vsel %vm934, 1, 0
        %v967 = vsel %vm935, 1, 0
        %v968 = vsel %vm936, 1, 0
        %v969 = vsel %vm937, 1, 0
        %v970 = vsel %vm938, 1, 0
        %v971 = vsel %vm939, 1, 0
        %v972 = vsel %vm940, 1, 0
        %v973 = vsel %vm941, 1, 0
        %v974 = vsel %vm942, 1, 0
        %v975 = vsel %vm943, 1, 0
        %v976 = vsel %vm944, 1, 0
        %v977 = vcvt.s32.f32 %v945
        %v978 = vcvt.s32.f32 %v946
        %v979 = vcvt.s32.f32 %v947
        %v980 = vcvt.s32.f32 %v948
        %v981 = vcvt.s32.f32 %v949
        %v982 = vcvt.s32.f32 %v950
        %v983 = vcvt.s32.f32 %v951
        %v984 = vcvt.s32.f32 %v952
        %v985 = vcvt.s32.f32 %v953
        %v986 = vcvt.s32.f32 %v954
        %v987 = vcvt.s32.f32 %v955
        %v988 = vcvt.s32.f32 %v956
        %v989 = vcvt.s32.f32 %v957
        %v990 = vcvt.s32.f32 %v958
        %v991 = vcvt.s32.f32 %v959
        %v992 = vcvt.s32.f32 %v960
        %v993 = vcvt.s32.f32 %v961
        %v994 = vcvt.s32.f32 %v962
        %v995 = vcvt.s32.f32 %v963
        %v996 = vcvt.s32.f32 %v964
        %v997 = vcvt.s32.f32 %v965
        %v998 = vcvt.s32.f32 %v966
        %v999 = vcvt.s32.f32 %v967
        %v1000 = vcvt.s32.f32 %v968
        %v1001 = vcvt.s32.f32 %v969
        %v1002 = vcvt.s32.f32 %v970
        %v1003 = vcvt.s32.f32 %v971
        %v1004 = vcvt.s32.f32 %v972
        %v1005 = vcvt.s32.f32 %v973
        %v1006 = vcvt.s32.f32 %v974
        %v1007 = vcvt.s32.f32 %v975
        %v1008 = vcvt.s32.f32 %v976
        %v1009 = vpack.c.bf16 %v978, %v977
        %v1010 = vpack.c.bf16 %v980, %v979
        %v1011 = vpack.c.bf16 %v982, %v981
        %v1012 = vpack.c.bf16 %v984, %v983
        %v1013 = vpack.c.bf16 %v986, %v985
        %v1014 = vpack.c.bf16 %v988, %v987
        %v1015 = vpack.c.bf16 %v990, %v989
        %v1016 = vpack.c.bf16 %v992, %v991
        %v1017 = vpack.c.bf16 %v994, %v993
        %v1018 = vpack.c.bf16 %v996, %v995
        %v1019 = vpack.c.bf16 %v998, %v997
        %v1020 = vpack.c.bf16 %v1000, %v999
        %v1021 = vpack.c.bf16 %v1002, %v1001
        %v1022 = vpack.c.bf16 %v1004, %v1003
        %v1023 = vpack.c.bf16 %v1006, %v1005
        %v1024 = vpack.c.bf16 %v1008, %v1007
        %v1025 = vld [vmem:[#allocation2] sm:$0xff]
        %v1026 = vld [vmem:[#allocation2 + $0x8] sm:$0xff]
        %v1027 = vld [vmem:[#allocation2 + $0x10] sm:$0xff]
        %v1028 = vld [vmem:[#allocation2 + $0x18] sm:$0xff]
        %v1029 = vld [vmem:[#allocation2 + $0x20] sm:$0xff]
        %v1030 = vld [vmem:[#allocation2 + $0x28] sm:$0xff]
        %v1031 = vld [vmem:[#allocation2 + $0x30] sm:$0xff]
        %v1032 = vld [vmem:[#allocation2 + $0x38] sm:$0xff]
        %v1033 = vld [vmem:[#allocation2 + $0x40] sm:$0xff]
        %v1034 = vld [vmem:[#allocation2 + $0x48] sm:$0xff]
        %v1035 = vld [vmem:[#allocation2 + $0x50] sm:$0xff]
        %v1036 = vld [vmem:[#allocation2 + $0x58] sm:$0xff]
        %v1037 = vld [vmem:[#allocation2 + $0x60] sm:$0xff]
        %v1038 = vld [vmem:[#allocation2 + $0x68] sm:$0xff]
        %v1039 = vld [vmem:[#allocation2 + $0x70] sm:$0xff]
        %v1040 = vld [vmem:[#allocation2 + $0x78] sm:$0xff]
        %1041 = vxpose.xlu0.c.b16.start [1/8] %v1009, 128
        %1042 = vxpose.xlu0.c.b16.cont [2/8] %v1010, 128
        %1043 = vxpose.xlu0.c.b16.cont [3/8] %v1011, 128
        %1044 = vxpose.xlu0.c.b16.cont [4/8] %v1012, 128
        %1045 = vxpose.xlu0.c.b16.cont [5/8] %v1013, 128
        %1046 = vxpose.xlu0.c.b16.cont [6/8] %v1014, 128
        %1047 = vxpose.xlu0.c.b16.cont [7/8] %v1015, 128
        %1048 = vxpose.xlu0.c.b16.end [8/8] %v1016, 128
        %v1049 = vpop.trf.xlu0
        %v1050 = vpop.trf.xlu0
        %v1051 = vpop.trf.xlu0
        %v1052 = vpop.trf.xlu0
        %v1053 = vpop.trf.xlu0
        %v1054 = vpop.trf.xlu0
        %v1055 = vpop.trf.xlu0
        %v1056 = vpop.trf.xlu0
        %1057 = vxpose.xlu0.c.b16.start [1/8] %v1017, 128
        %1058 = vxpose.xlu0.c.b16.cont [2/8] %v1018, 128
        %1059 = vxpose.xlu0.c.b16.cont [3/8] %v1019, 128
        %1060 = vxpose.xlu0.c.b16.cont [4/8] %v1020, 128
        %1061 = vxpose.xlu0.c.b16.cont [5/8] %v1021, 128
        %1062 = vxpose.xlu0.c.b16.cont [6/8] %v1022, 128
        %1063 = vxpose.xlu0.c.b16.cont [7/8] %v1023, 128
        %1064 = vxpose.xlu0.c.b16.end [8/8] %v1024, 128
        %v1065 = vpop.trf.xlu0
        %v1066 = vpop.trf.xlu0
        %v1067 = vpop.trf.xlu0
        %v1068 = vpop.trf.xlu0
        %v1069 = vpop.trf.xlu0
        %v1070 = vpop.trf.xlu0
        %v1071 = vpop.trf.xlu0
        %v1072 = vpop.trf.xlu0
        %v1105 = vunpack.c.l.b16 %v717
        %v1106 = vunpack.c.l.b16 %v718
        %v1107 = vunpack.c.l.b16 %v719
        %v1108 = vunpack.c.l.b16 %v720
        %v1109 = vunpack.c.l.b16 %v721
        %v1110 = vunpack.c.l.b16 %v722
        %v1111 = vunpack.c.l.b16 %v723
        %v1112 = vunpack.c.l.b16 %v724
        %v1113 = vunpack.c.l.b16 %v725
        %v1114 = vunpack.c.l.b16 %v726
        %v1115 = vunpack.c.l.b16 %v727
        %v1116 = vunpack.c.l.b16 %v728
        %v1117 = vunpack.c.l.b16 %v729
        %v1118 = vunpack.c.l.b16 %v730
        %v1119 = vunpack.c.l.b16 %v731
        %v1120 = vunpack.c.l.b16 %v732
        %v1121 = vunpack.c.l.b16 %v733
        %v1122 = vunpack.c.l.b16 %v734
        %v1123 = vunpack.c.l.b16 %v735
        %v1124 = vunpack.c.l.b16 %v736
        %v1125 = vunpack.c.l.b16 %v737
        %v1126 = vunpack.c.l.b16 %v738
        %v1127 = vunpack.c.l.b16 %v739
        %v1128 = vunpack.c.l.b16 %v740
        %v1129 = vunpack.c.l.b16 %v741
        %v1130 = vunpack.c.l.b16 %v742
        %v1131 = vunpack.c.l.b16 %v743
        %v1132 = vunpack.c.l.b16 %v744
        %v1133 = vunpack.c.l.b16 %v745
        %v1134 = vunpack.c.l.b16 %v746
        %v1135 = vunpack.c.l.b16 %v747
        %v1136 = vunpack.c.l.b16 %v748
        %v1137 = vpack.c.b16 %v1106, %v1105
        %v1138 = vpack.c.b16 %v1108, %v1107
        %v1139 = vpack.c.b16 %v1110, %v1109
        %v1140 = vpack.c.b16 %v1112, %v1111
        %v1141 = vpack.c.b16 %v1114, %v1113
        %v1142 = vpack.c.b16 %v1116, %v1115
        %v1143 = vpack.c.b16 %v1118, %v1117
        %v1144 = vpack.c.b16 %v1120, %v1119
        %v1145 = vpack.c.b16 %v1122, %v1121
        %v1146 = vpack.c.b16 %v1124, %v1123
        %v1147 = vpack.c.b16 %v1126, %v1125
        %v1148 = vpack.c.b16 %v1128, %v1127
        %v1149 = vpack.c.b16 %v1130, %v1129
        %v1150 = vpack.c.b16 %v1132, %v1131
        %v1151 = vpack.c.b16 %v1134, %v1133
        %v1152 = vpack.c.b16 %v1136, %v1135
        %1169 = vmatprep.subr.bf16.mxu0 0
        %1170 = vmatpush1.bf16.msra.mxu0 %v1144
        %1171 = vmatprep.subr.bf16.mxu0 0
        %1172 = vmatpush1.bf16.msra.mxu0 %v1143
        %1173 = vmatprep.subr.bf16.mxu0 0
        %1174 = vmatpush1.bf16.msra.mxu0 %v1142
        %1175 = vmatprep.subr.bf16.mxu0 0
        %1176 = vmatpush1.bf16.msra.mxu0 %v1141
        %1177 = vmatprep.subr.bf16.mxu0 0
        %1178 = vmatpush1.bf16.msra.mxu0 %v1140
        %1179 = vmatprep.subr.bf16.mxu0 0
        %1180 = vmatpush1.bf16.msra.mxu0 %v1139
        %1181 = vmatprep.subr.bf16.mxu0 0
        %1182 = vmatpush1.bf16.msra.mxu0 %v1138
        %1183 = vmatprep.subr.bf16.mxu0 0
        %1184 = vmatpush1.bf16.msra.mxu0 %v1137
        %1185 = vmatprep.subr.bf16.mxu0 0
        %1186 = vmatpush2.bf16.msra.mxu0 %v1152
        %1187 = vmatprep.subr.bf16.mxu0 0
        %1188 = vmatpush2.bf16.msra.mxu0 %v1151
        %1189 = vmatprep.subr.bf16.mxu0 0
        %1190 = vmatpush2.bf16.msra.mxu0 %v1150
        %1191 = vmatprep.subr.bf16.mxu0 0
        %1192 = vmatpush2.bf16.msra.mxu0 %v1149
        %1193 = vmatprep.subr.bf16.mxu0 0
        %1194 = vmatpush2.bf16.msra.mxu0 %v1148
        %1195 = vmatprep.subr.bf16.mxu0 0
        %1196 = vmatpush2.bf16.msra.mxu0 %v1147
        %1197 = vmatprep.subr.bf16.mxu0 0
        %1198 = vmatpush2.bf16.msra.mxu0 %v1146
        %1199 = vmatprep.subr.bf16.mxu0 0
        %1200 = vmatpush2.bf16.msra.mxu0 %v1145
        %1201 = vmatprep.mubr.bf16.mxu0 %v1065
        %1202 = vmatmul.mubr.bf16.gmra.mxu0 %v1049
        %v1203 = vpop.f32.mrf.mxu0
        %v1204 = vadd.f32 0.0, %v1203
        %v1205 = vpop.f32.mrf.mxu0
        %v1206 = vpop.f32.mrf.mxu0
        %v1207 = vadd.f32 0.0, %v1206
        %v1208 = vpop.f32.mrf.mxu0
        %1209 = vmatprep.mubr.bf16.mxu0 %v1066
        %1210 = vmatmul.mubr.bf16.gmra.mxu0 %v1050
        %v1211 = vpop.f32.mrf.mxu0
        %v1212 = vadd.f32 0.0, %v1211
        %v1213 = vpop.f32.mrf.mxu0
        %v1214 = vpop.f32.mrf.mxu0
        %v1215 = vadd.f32 0.0, %v1214
        %v1216 = vpop.f32.mrf.mxu0
        %1217 = vmatprep.mubr.bf16.mxu0 %v1067
        %1218 = vmatmul.mubr.bf16.gmra.mxu0 %v1051
        %v1219 = vpop.f32.mrf.mxu0
        %v1220 = vadd.f32 0.0, %v1219
        %v1221 = vpop.f32.mrf.mxu0
        %v1222 = vpop.f32.mrf.mxu0
        %v1223 = vadd.f32 0.0, %v1222
        %v1224 = vpop.f32.mrf.mxu0
        %1225 = vmatprep.mubr.bf16.mxu0 %v1068
        %1226 = vmatmul.mubr.bf16.gmra.mxu0 %v1052
        %v1227 = vpop.f32.mrf.mxu0
        %v1228 = vadd.f32 0.0, %v1227
        %v1229 = vpop.f32.mrf.mxu0
        %v1230 = vpop.f32.mrf.mxu0
        %v1231 = vadd.f32 0.0, %v1230
        %v1232 = vpop.f32.mrf.mxu0
        %1233 = vmatprep.mubr.bf16.mxu0 %v1069
        %1234 = vmatmul.mubr.bf16.gmra.mxu0 %v1053
        %v1235 = vpop.f32.mrf.mxu0
        %v1236 = vadd.f32 0.0, %v1235
        %v1237 = vpop.f32.mrf.mxu0
        %v1238 = vpop.f32.mrf.mxu0
        %v1239 = vadd.f32 0.0, %v1238
        %v1240 = vpop.f32.mrf.mxu0
        %1241 = vmatprep.mubr.bf16.mxu0 %v1070
        %1242 = vmatmul.mubr.bf16.gmra.mxu0 %v1054
        %v1243 = vpop.f32.mrf.mxu0
        %v1244 = vadd.f32 0.0, %v1243
        %v1245 = vpop.f32.mrf.mxu0
        %v1246 = vpop.f32.mrf.mxu0
        %v1247 = vadd.f32 0.0, %v1246
        %v1248 = vpop.f32.mrf.mxu0
        %1249 = vmatprep.mubr.bf16.mxu0 %v1071
        %1250 = vmatmul.mubr.bf16.gmra.mxu0 %v1055
        %v1251 = vpop.f32.mrf.mxu0
        %v1252 = vadd.f32 0.0, %v1251
        %v1253 = vpop.f32.mrf.mxu0
        %v1254 = vpop.f32.mrf.mxu0
        %v1255 = vadd.f32 0.0, %v1254
        %v1256 = vpop.f32.mrf.mxu0
        %1257 = vmatprep.mubr.bf16.mxu0 %v1072
        %1258 = vmatmul.mubr.bf16.gmra.mxu0 %v1056
        %v1259 = vpop.f32.mrf.mxu0
        %v1260 = vadd.f32 0.0, %v1259
        %v1261 = vpop.f32.mrf.mxu0
        %v1262 = vpop.f32.mrf.mxu0
        %v1263 = vadd.f32 0.0, %v1262
        %v1264 = vpop.f32.mrf.mxu0
        %1265 = vdwg.mxu0
        %v1266 = vadd.f32 %v1025, %v1204
        %v1267 = vadd.f32 %v1026, %v1207
        %v1268 = vadd.f32 %v1027, %v1212
        %v1269 = vadd.f32 %v1028, %v1215
        %v1270 = vadd.f32 %v1029, %v1220
        %v1271 = vadd.f32 %v1030, %v1223
        %v1272 = vadd.f32 %v1031, %v1228
        %v1273 = vadd.f32 %v1032, %v1231
        %v1274 = vadd.f32 %v1033, %v1236
        %v1275 = vadd.f32 %v1034, %v1239
        %v1276 = vadd.f32 %v1035, %v1244
        %v1277 = vadd.f32 %v1036, %v1247
        %v1278 = vadd.f32 %v1037, %v1252
        %v1279 = vadd.f32 %v1038, %v1255
        %v1280 = vadd.f32 %v1039, %v1260
        %v1281 = vadd.f32 %v1040, %v1263
        %1282 = vst [vmem:[#allocation2] sm:$0xff] %v1266
        %1283 = vst [vmem:[#allocation2 + $0x8] sm:$0xff] %v1267
        %1284 = vst [vmem:[#allocation2 + $0x10] sm:$0xff] %v1268
        %1285 = vst [vmem:[#allocation2 + $0x18] sm:$0xff] %v1269
        %1286 = vst [vmem:[#allocation2 + $0x20] sm:$0xff] %v1270
        %1287 = vst [vmem:[#allocation2 + $0x28] sm:$0xff] %v1271
        %1288 = vst [vmem:[#allocation2 + $0x30] sm:$0xff] %v1272
        %1289 = vst [vmem:[#allocation2 + $0x38] sm:$0xff] %v1273
        %1290 = vst [vmem:[#allocation2 + $0x40] sm:$0xff] %v1274
        %1291 = vst [vmem:[#allocation2 + $0x48] sm:$0xff] %v1275
        %1292 = vst [vmem:[#allocation2 + $0x50] sm:$0xff] %v1276
        %1293 = vst [vmem:[#allocation2 + $0x58] sm:$0xff] %v1277
        %1294 = vst [vmem:[#allocation2 + $0x60] sm:$0xff] %v1278
        %1295 = vst [vmem:[#allocation2 + $0x68] sm:$0xff] %v1279
        %1296 = vst [vmem:[#allocation2 + $0x70] sm:$0xff] %v1280
        %1297 = vst [vmem:[#allocation2 + $0x78] sm:$0xff] %v1281
      $region64: #{gine_layer_light.1} parent=55 // pred_fallthru
        _
      %p1298 = scmp.eq.s32.totalorder %s38, 1
      // Predicated region
      $region65: #{gine_layer_light.1} parent=55 // pred_check
        %p1299 = pneg %p1298
      $region66: #{gine_layer_light.1} parent=55 // pred_check_branch
        %1301 = sbr.rel (%p1299) target = $region68
      $region67: #{gine_layer_light.1} parent=55 // pred_region
        %s1302 = sld [smem:[#allocation6]]
        %v1303 = vld [vmem:[%s521] sm:$0xff]
        %v1304 = vld [vmem:[%s521 + $0x8] sm:$0xff]
        %v1305 = vld [vmem:[%s521 + $0x10] sm:$0xff]
        %v1306 = vld [vmem:[%s521 + $0x18] sm:$0xff]
        %v1307 = vld [vmem:[%s521 + $0x20] sm:$0xff]
        %v1308 = vld [vmem:[%s521 + $0x28] sm:$0xff]
        %v1309 = vld [vmem:[%s521 + $0x30] sm:$0xff]
        %v1310 = vld [vmem:[%s521 + $0x38] sm:$0xff]
        %v1311 = vld [vmem:[%s521 + $0x40] sm:$0xff]
        %v1312 = vld [vmem:[%s521 + $0x48] sm:$0xff]
        %v1313 = vld [vmem:[%s521 + $0x50] sm:$0xff]
        %v1314 = vld [vmem:[%s521 + $0x58] sm:$0xff]
        %v1315 = vld [vmem:[%s521 + $0x60] sm:$0xff]
        %v1316 = vld [vmem:[%s521 + $0x68] sm:$0xff]
        %v1317 = vld [vmem:[%s521 + $0x70] sm:$0xff]
        %v1318 = vld [vmem:[%s521 + $0x78] sm:$0xff]
        %v1319 = vstv %s1302
        %v1320 = vmul.f32 %v1319, %v1303
        %v1321 = vmul.f32 %v1319, %v1304
        %v1322 = vmul.f32 %v1319, %v1305
        %v1323 = vmul.f32 %v1319, %v1306
        %v1324 = vmul.f32 %v1319, %v1307
        %v1325 = vmul.f32 %v1319, %v1308
        %v1326 = vmul.f32 %v1319, %v1309
        %v1327 = vmul.f32 %v1319, %v1310
        %v1328 = vmul.f32 %v1319, %v1311
        %v1329 = vmul.f32 %v1319, %v1312
        %v1330 = vmul.f32 %v1319, %v1313
        %v1331 = vmul.f32 %v1319, %v1314
        %v1332 = vmul.f32 %v1319, %v1315
        %v1333 = vmul.f32 %v1319, %v1316
        %v1334 = vmul.f32 %v1319, %v1317
        %v1335 = vmul.f32 %v1319, %v1318
        %v1336 = vld [vmem:[#allocation2] sm:$0xff]
        %v1337 = vld [vmem:[#allocation2 + $0x8] sm:$0xff]
        %v1338 = vld [vmem:[#allocation2 + $0x10] sm:$0xff]
        %v1339 = vld [vmem:[#allocation2 + $0x18] sm:$0xff]
        %v1340 = vld [vmem:[#allocation2 + $0x20] sm:$0xff]
        %v1341 = vld [vmem:[#allocation2 + $0x28] sm:$0xff]
        %v1342 = vld [vmem:[#allocation2 + $0x30] sm:$0xff]
        %v1343 = vld [vmem:[#allocation2 + $0x38] sm:$0xff]
        %v1344 = vld [vmem:[#allocation2 + $0x40] sm:$0xff]
        %v1345 = vld [vmem:[#allocation2 + $0x48] sm:$0xff]
        %v1346 = vld [vmem:[#allocation2 + $0x50] sm:$0xff]
        %v1347 = vld [vmem:[#allocation2 + $0x58] sm:$0xff]
        %v1348 = vld [vmem:[#allocation2 + $0x60] sm:$0xff]
        %v1349 = vld [vmem:[#allocation2 + $0x68] sm:$0xff]
        %v1350 = vld [vmem:[#allocation2 + $0x70] sm:$0xff]
        %v1351 = vld [vmem:[#allocation2 + $0x78] sm:$0xff]
        %v1352 = vadd.f32 %v1320, %v1336
        %v1353 = vadd.f32 %v1321, %v1337
        %v1354 = vadd.f32 %v1322, %v1338
        %v1355 = vadd.f32 %v1323, %v1339
        %v1356 = vadd.f32 %v1324, %v1340
        %v1357 = vadd.f32 %v1325, %v1341
        %v1358 = vadd.f32 %v1326, %v1342
        %v1359 = vadd.f32 %v1327, %v1343
        %v1360 = vadd.f32 %v1328, %v1344
        %v1361 = vadd.f32 %v1329, %v1345
        %v1362 = vadd.f32 %v1330, %v1346
        %v1363 = vadd.f32 %v1331, %v1347
        %v1364 = vadd.f32 %v1332, %v1348
        %v1365 = vadd.f32 %v1333, %v1349
        %v1366 = vadd.f32 %v1334, %v1350
        %v1367 = vadd.f32 %v1335, %v1351
        %v1368 = vpack.c.bf16 %v1353, %v1352
        %v1369 = vpack.c.bf16 %v1355, %v1354
        %v1370 = vpack.c.bf16 %v1357, %v1356
        %v1371 = vpack.c.bf16 %v1359, %v1358
        %v1372 = vpack.c.bf16 %v1361, %v1360
        %v1373 = vpack.c.bf16 %v1363, %v1362
        %v1374 = vpack.c.bf16 %v1365, %v1364
        %v1375 = vpack.c.bf16 %v1367, %v1366
        %v1376 = vld [vmem:[%s7] sm:$0xf]
        %v1377 = vld [vmem:[%s7 + $0x4] sm:$0xf]
        %v1378 = vld [vmem:[%s7 + $0x8] sm:$0xf]
        %v1379 = vld [vmem:[%s7 + $0xc] sm:$0xf]
        %v1380 = vld [vmem:[%s7 + $0x10] sm:$0xf]
        %v1381 = vld [vmem:[%s7 + $0x14] sm:$0xf]
        %v1382 = vld [vmem:[%s7 + $0x18] sm:$0xf]
        %v1383 = vld [vmem:[%s7 + $0x1c] sm:$0xf]
        %v1384 = vld [vmem:[%s7 + $0x20] sm:$0xf]
        %v1385 = vld [vmem:[%s7 + $0x24] sm:$0xf]
        %v1386 = vld [vmem:[%s7 + $0x28] sm:$0xf]
        %v1387 = vld [vmem:[%s7 + $0x2c] sm:$0xf]
        %v1388 = vld [vmem:[%s7 + $0x30] sm:$0xf]
        %v1389 = vld [vmem:[%s7 + $0x34] sm:$0xf]
        %v1390 = vld [vmem:[%s7 + $0x38] sm:$0xf]
        %v1391 = vld [vmem:[%s7 + $0x3c] sm:$0xf]
        %v1392 = vld [vmem:[%s8] sm:$0x1]
        %v1394 = vlaneseq
        %v1395 = vshrl.u32 %v1394, 7
        %v1396 = vsub.s32 0, %v1395
        %v1397 = vrot.slane %v1392, %v1396
        %v1415 = vunpack.c.l.b16 %v1376
        %v1416 = vunpack.c.l.b16 %v1377
        %v1417 = vunpack.c.l.b16 %v1378
        %v1418 = vunpack.c.l.b16 %v1379
        %v1419 = vunpack.c.l.b16 %v1380
        %v1420 = vunpack.c.l.b16 %v1381
        %v1421 = vunpack.c.l.b16 %v1382
        %v1422 = vunpack.c.l.b16 %v1383
        %v1423 = vunpack.c.l.b16 %v1384
        %v1424 = vunpack.c.l.b16 %v1385
        %v1425 = vunpack.c.l.b16 %v1386
        %v1426 = vunpack.c.l.b16 %v1387
        %v1427 = vunpack.c.l.b16 %v1388
        %v1428 = vunpack.c.l.b16 %v1389
        %v1429 = vunpack.c.l.b16 %v1390
        %v1430 = vunpack.c.l.b16 %v1391
        %v1431 = vpack.c.b16 %v1416, %v1415
        %v1432 = vpack.c.b16 %v1418, %v1417
        %v1433 = vpack.c.b16 %v1420, %v1419
        %v1434 = vpack.c.b16 %v1422, %v1421
        %v1435 = vpack.c.b16 %v1424, %v1423
        %v1436 = vpack.c.b16 %v1426, %v1425
        %v1437 = vpack.c.b16 %v1428, %v1427
        %v1438 = vpack.c.b16 %v1430, %v1429
        %1447 = vmatprep.subr.bf16.mxu0 0
        %1448 = vmatpush1.bf16.msra.mxu0 %v1438
        %1449 = vmatprep.subr.bf16.mxu0 0
        %1450 = vmatpush1.bf16.msra.mxu0 %v1437
        %1451 = vmatprep.subr.bf16.mxu0 0
        %1452 = vmatpush1.bf16.msra.mxu0 %v1436
        %1453 = vmatprep.subr.bf16.mxu0 0
        %1454 = vmatpush1.bf16.msra.mxu0 %v1435
        %1455 = vmatprep.subr.bf16.mxu0 0
        %1456 = vmatpush1.bf16.msra.mxu0 %v1434
        %1457 = vmatprep.subr.bf16.mxu0 0
        %1458 = vmatpush1.bf16.msra.mxu0 %v1433
        %1459 = vmatprep.subr.bf16.mxu0 0
        %1460 = vmatpush1.bf16.msra.mxu0 %v1432
        %1461 = vmatprep.subr.bf16.mxu0 0
        %1462 = vmatpush1.bf16.msra.mxu0 %v1431
        %1463 = vmatprep.subr.bf16.mxu0 0
        %1464 = vmatpush2.bf16.msra.mxu0 0
        %1465 = vmatprep.subr.bf16.mxu0 0
        %1466 = vmatpush2.bf16.msra.mxu0 0
        %1467 = vmatprep.subr.bf16.mxu0 0
        %1468 = vmatpush2.bf16.msra.mxu0 0
        %1469 = vmatprep.subr.bf16.mxu0 0
        %1470 = vmatpush2.bf16.msra.mxu0 0
        %1471 = vmatprep.subr.bf16.mxu0 0
        %1472 = vmatpush2.bf16.msra.mxu0 0
        %1473 = vmatprep.subr.bf16.mxu0 0
        %1474 = vmatpush2.bf16.msra.mxu0 0
        %1475 = vmatprep.subr.bf16.mxu0 0
        %1476 = vmatpush2.bf16.msra.mxu0 0
        %1477 = vmatprep.subr.bf16.mxu0 0
        %1478 = vmatpush2.bf16.msra.mxu0 0
        %1479 = vmatprep.mubr.bf16.mxu0 0
        %1480 = vmatmul.mubr.bf16.gmra.mxu0 %v1368
        %v1481 = vpop.f32.mrf.mxu0
        %v1482 = vadd.f32 %v1397, %v1481
        %v1483 = vpop.f32.mrf.mxu0
        %v1484 = vpop.f32.mrf.mxu0
        %v1485 = vadd.f32 %v1397, %v1484
        %v1486 = vpop.f32.mrf.mxu0
        %1487 = vmatprep.mubr.bf16.mxu0 0
        %1488 = vmatmul.mubr.bf16.gmra.mxu0 %v1369
        %v1489 = vpop.f32.mrf.mxu0
        %v1490 = vadd.f32 %v1397, %v1489
        %v1491 = vpop.f32.mrf.mxu0
        %v1492 = vpop.f32.mrf.mxu0
        %v1493 = vadd.f32 %v1397, %v1492
        %v1494 = vpop.f32.mrf.mxu0
        %1495 = vmatprep.mubr.bf16.mxu0 0
        %1496 = vmatmul.mubr.bf16.gmra.mxu0 %v1370
        %v1497 = vpop.f32.mrf.mxu0
        %v1498 = vadd.f32 %v1397, %v1497
        %v1499 = vpop.f32.mrf.mxu0
        %v1500 = vpop.f32.mrf.mxu0
        %v1501 = vadd.f32 %v1397, %v1500
        %v1502 = vpop.f32.mrf.mxu0
        %1503 = vmatprep.mubr.bf16.mxu0 0
        %1504 = vmatmul.mubr.bf16.gmra.mxu0 %v1371
        %v1505 = vpop.f32.mrf.mxu0
        %v1506 = vadd.f32 %v1397, %v1505
        %v1507 = vpop.f32.mrf.mxu0
        %v1508 = vpop.f32.mrf.mxu0
        %v1509 = vadd.f32 %v1397, %v1508
        %v1510 = vpop.f32.mrf.mxu0
        %1511 = vmatprep.mubr.bf16.mxu0 0
        %1512 = vmatmul.mubr.bf16.gmra.mxu0 %v1372
        %v1513 = vpop.f32.mrf.mxu0
        %v1514 = vadd.f32 %v1397, %v1513
        %v1515 = vpop.f32.mrf.mxu0
        %v1516 = vpop.f32.mrf.mxu0
        %v1517 = vadd.f32 %v1397, %v1516
        %v1518 = vpop.f32.mrf.mxu0
        %1519 = vmatprep.mubr.bf16.mxu0 0
        %1520 = vmatmul.mubr.bf16.gmra.mxu0 %v1373
        %v1521 = vpop.f32.mrf.mxu0
        %v1522 = vadd.f32 %v1397, %v1521
        %v1523 = vpop.f32.mrf.mxu0
        %v1524 = vpop.f32.mrf.mxu0
        %v1525 = vadd.f32 %v1397, %v1524
        %v1526 = vpop.f32.mrf.mxu0
        %1527 = vmatprep.mubr.bf16.mxu0 0
        %1528 = vmatmul.mubr.bf16.gmra.mxu0 %v1374
        %v1529 = vpop.f32.mrf.mxu0
        %v1530 = vadd.f32 %v1397, %v1529
        %v1531 = vpop.f32.mrf.mxu0
        %v1532 = vpop.f32.mrf.mxu0
        %v1533 = vadd.f32 %v1397, %v1532
        %v1534 = vpop.f32.mrf.mxu0
        %1535 = vmatprep.mubr.bf16.mxu0 0
        %1536 = vmatmul.mubr.bf16.gmra.mxu0 %v1375
        %v1537 = vpop.f32.mrf.mxu0
        %v1538 = vadd.f32 %v1397, %v1537
        %v1539 = vpop.f32.mrf.mxu0
        %v1540 = vpop.f32.mrf.mxu0
        %v1541 = vadd.f32 %v1397, %v1540
        %v1542 = vpop.f32.mrf.mxu0
        %1543 = vdwg.mxu0
        %v1544 = vmax.f32 %v1482, 0.0
        %v1545 = vmax.f32 %v1485, 0.0
        %v1546 = vmax.f32 %v1490, 0.0
        %v1547 = vmax.f32 %v1493, 0.0
        %v1548 = vmax.f32 %v1498, 0.0
        %v1549 = vmax.f32 %v1501, 0.0
        %v1550 = vmax.f32 %v1506, 0.0
        %v1551 = vmax.f32 %v1509, 0.0
        %v1552 = vmax.f32 %v1514, 0.0
        %v1553 = vmax.f32 %v1517, 0.0
        %v1554 = vmax.f32 %v1522, 0.0
        %v1555 = vmax.f32 %v1525, 0.0
        %v1556 = vmax.f32 %v1530, 0.0
        %v1557 = vmax.f32 %v1533, 0.0
        %v1558 = vmax.f32 %v1538, 0.0
        %v1559 = vmax.f32 %v1541, 0.0
        %v1560 = vpack.c.bf16 %v1545, %v1544
        %v1561 = vpack.c.bf16 %v1547, %v1546
        %v1562 = vpack.c.bf16 %v1549, %v1548
        %v1563 = vpack.c.bf16 %v1551, %v1550
        %v1564 = vpack.c.bf16 %v1553, %v1552
        %v1565 = vpack.c.bf16 %v1555, %v1554
        %v1566 = vpack.c.bf16 %v1557, %v1556
        %v1567 = vpack.c.bf16 %v1559, %v1558
        %v1568 = vld [vmem:[%s9] sm:$0xf]
        %v1569 = vld [vmem:[%s9 + $0x4] sm:$0xf]
        %v1570 = vld [vmem:[%s9 + $0x8] sm:$0xf]
        %v1571 = vld [vmem:[%s9 + $0xc] sm:$0xf]
        %v1572 = vld [vmem:[%s9 + $0x10] sm:$0xf]
        %v1573 = vld [vmem:[%s9 + $0x14] sm:$0xf]
        %v1574 = vld [vmem:[%s9 + $0x18] sm:$0xf]
        %v1575 = vld [vmem:[%s9 + $0x1c] sm:$0xf]
        %v1576 = vld [vmem:[%s9 + $0x20] sm:$0xf]
        %v1577 = vld [vmem:[%s9 + $0x24] sm:$0xf]
        %v1578 = vld [vmem:[%s9 + $0x28] sm:$0xf]
        %v1579 = vld [vmem:[%s9 + $0x2c] sm:$0xf]
        %v1580 = vld [vmem:[%s9 + $0x30] sm:$0xf]
        %v1581 = vld [vmem:[%s9 + $0x34] sm:$0xf]
        %v1582 = vld [vmem:[%s9 + $0x38] sm:$0xf]
        %v1583 = vld [vmem:[%s9 + $0x3c] sm:$0xf]
        %v1584 = vld [vmem:[%s10] sm:$0x1]
        %v1586 = vlaneseq
        %v1587 = vshrl.u32 %v1586, 7
        %v1588 = vsub.s32 0, %v1587
        %v1589 = vrot.slane %v1584, %v1588
        %v1607 = vunpack.c.l.b16 %v1568
        %v1608 = vunpack.c.l.b16 %v1569
        %v1609 = vunpack.c.l.b16 %v1570
        %v1610 = vunpack.c.l.b16 %v1571
        %v1611 = vunpack.c.l.b16 %v1572
        %v1612 = vunpack.c.l.b16 %v1573
        %v1613 = vunpack.c.l.b16 %v1574
        %v1614 = vunpack.c.l.b16 %v1575
        %v1615 = vunpack.c.l.b16 %v1576
        %v1616 = vunpack.c.l.b16 %v1577
        %v1617 = vunpack.c.l.b16 %v1578
        %v1618 = vunpack.c.l.b16 %v1579
        %v1619 = vunpack.c.l.b16 %v1580
        %v1620 = vunpack.c.l.b16 %v1581
        %v1621 = vunpack.c.l.b16 %v1582
        %v1622 = vunpack.c.l.b16 %v1583
        %v1623 = vpack.c.b16 %v1608, %v1607
        %v1624 = vpack.c.b16 %v1610, %v1609
        %v1625 = vpack.c.b16 %v1612, %v1611
        %v1626 = vpack.c.b16 %v1614, %v1613
        %v1627 = vpack.c.b16 %v1616, %v1615
        %v1628 = vpack.c.b16 %v1618, %v1617
        %v1629 = vpack.c.b16 %v1620, %v1619
        %v1630 = vpack.c.b16 %v1622, %v1621
        %1639 = vmatprep.subr.bf16.mxu0 0
        %1640 = vmatpush1.bf16.msra.mxu0 %v1630
        %1641 = vmatprep.subr.bf16.mxu0 0
        %1642 = vmatpush1.bf16.msra.mxu0 %v1629
        %1643 = vmatprep.subr.bf16.mxu0 0
        %1644 = vmatpush1.bf16.msra.mxu0 %v1628
        %1645 = vmatprep.subr.bf16.mxu0 0
        %1646 = vmatpush1.bf16.msra.mxu0 %v1627
        %1647 = vmatprep.subr.bf16.mxu0 0
        %1648 = vmatpush1.bf16.msra.mxu0 %v1626
        %1649 = vmatprep.subr.bf16.mxu0 0
        %1650 = vmatpush1.bf16.msra.mxu0 %v1625
        %1651 = vmatprep.subr.bf16.mxu0 0
        %1652 = vmatpush1.bf16.msra.mxu0 %v1624
        %1653 = vmatprep.subr.bf16.mxu0 0
        %1654 = vmatpush1.bf16.msra.mxu0 %v1623
        %1655 = vmatprep.subr.bf16.mxu0 0
        %1656 = vmatpush2.bf16.msra.mxu0 0
        %1657 = vmatprep.subr.bf16.mxu0 0
        %1658 = vmatpush2.bf16.msra.mxu0 0
        %1659 = vmatprep.subr.bf16.mxu0 0
        %1660 = vmatpush2.bf16.msra.mxu0 0
        %1661 = vmatprep.subr.bf16.mxu0 0
        %1662 = vmatpush2.bf16.msra.mxu0 0
        %1663 = vmatprep.subr.bf16.mxu0 0
        %1664 = vmatpush2.bf16.msra.mxu0 0
        %1665 = vmatprep.subr.bf16.mxu0 0
        %1666 = vmatpush2.bf16.msra.mxu0 0
        %1667 = vmatprep.subr.bf16.mxu0 0
        %1668 = vmatpush2.bf16.msra.mxu0 0
        %1669 = vmatprep.subr.bf16.mxu0 0
        %1670 = vmatpush2.bf16.msra.mxu0 0
        %1671 = vmatprep.mubr.bf16.mxu0 0
        %1672 = vmatmul.mubr.bf16.gmra.mxu0 %v1560
        %v1673 = vpop.f32.mrf.mxu0
        %v1674 = vadd.f32 %v1589, %v1673
        %v1675 = vpop.f32.mrf.mxu0
        %v1676 = vpop.f32.mrf.mxu0
        %v1677 = vadd.f32 %v1589, %v1676
        %v1678 = vpop.f32.mrf.mxu0
        %1679 = vmatprep.mubr.bf16.mxu0 0
        %1680 = vmatmul.mubr.bf16.gmra.mxu0 %v1561
        %v1681 = vpop.f32.mrf.mxu0
        %v1682 = vadd.f32 %v1589, %v1681
        %v1683 = vpop.f32.mrf.mxu0
        %v1684 = vpop.f32.mrf.mxu0
        %v1685 = vadd.f32 %v1589, %v1684
        %v1686 = vpop.f32.mrf.mxu0
        %1687 = vmatprep.mubr.bf16.mxu0 0
        %1688 = vmatmul.mubr.bf16.gmra.mxu0 %v1562
        %v1689 = vpop.f32.mrf.mxu0
        %v1690 = vadd.f32 %v1589, %v1689
        %v1691 = vpop.f32.mrf.mxu0
        %v1692 = vpop.f32.mrf.mxu0
        %v1693 = vadd.f32 %v1589, %v1692
        %v1694 = vpop.f32.mrf.mxu0
        %1695 = vmatprep.mubr.bf16.mxu0 0
        %1696 = vmatmul.mubr.bf16.gmra.mxu0 %v1563
        %v1697 = vpop.f32.mrf.mxu0
        %v1698 = vadd.f32 %v1589, %v1697
        %v1699 = vpop.f32.mrf.mxu0
        %v1700 = vpop.f32.mrf.mxu0
        %v1701 = vadd.f32 %v1589, %v1700
        %v1702 = vpop.f32.mrf.mxu0
        %1703 = vmatprep.mubr.bf16.mxu0 0
        %1704 = vmatmul.mubr.bf16.gmra.mxu0 %v1564
        %v1705 = vpop.f32.mrf.mxu0
        %v1706 = vadd.f32 %v1589, %v1705
        %v1707 = vpop.f32.mrf.mxu0
        %v1708 = vpop.f32.mrf.mxu0
        %v1709 = vadd.f32 %v1589, %v1708
        %v1710 = vpop.f32.mrf.mxu0
        %1711 = vmatprep.mubr.bf16.mxu0 0
        %1712 = vmatmul.mubr.bf16.gmra.mxu0 %v1565
        %v1713 = vpop.f32.mrf.mxu0
        %v1714 = vadd.f32 %v1589, %v1713
        %v1715 = vpop.f32.mrf.mxu0
        %v1716 = vpop.f32.mrf.mxu0
        %v1717 = vadd.f32 %v1589, %v1716
        %v1718 = vpop.f32.mrf.mxu0
        %1719 = vmatprep.mubr.bf16.mxu0 0
        %1720 = vmatmul.mubr.bf16.gmra.mxu0 %v1566
        %v1721 = vpop.f32.mrf.mxu0
        %v1722 = vadd.f32 %v1589, %v1721
        %v1723 = vpop.f32.mrf.mxu0
        %v1724 = vpop.f32.mrf.mxu0
        %v1725 = vadd.f32 %v1589, %v1724
        %v1726 = vpop.f32.mrf.mxu0
        %1727 = vmatprep.mubr.bf16.mxu0 0
        %1728 = vmatmul.mubr.bf16.gmra.mxu0 %v1567
        %v1729 = vpop.f32.mrf.mxu0
        %v1730 = vadd.f32 %v1589, %v1729
        %v1731 = vpop.f32.mrf.mxu0
        %v1732 = vpop.f32.mrf.mxu0
        %v1733 = vadd.f32 %v1589, %v1732
        %v1734 = vpop.f32.mrf.mxu0
        %1735 = vdwg.mxu0
        %v1736 = vmax.f32 %v1674, 0.0
        %v1737 = vmax.f32 %v1677, 0.0
        %v1738 = vmax.f32 %v1682, 0.0
        %v1739 = vmax.f32 %v1685, 0.0
        %v1740 = vmax.f32 %v1690, 0.0
        %v1741 = vmax.f32 %v1693, 0.0
        %v1742 = vmax.f32 %v1698, 0.0
        %v1743 = vmax.f32 %v1701, 0.0
        %v1744 = vmax.f32 %v1706, 0.0
        %v1745 = vmax.f32 %v1709, 0.0
        %v1746 = vmax.f32 %v1714, 0.0
        %v1747 = vmax.f32 %v1717, 0.0
        %v1748 = vmax.f32 %v1722, 0.0
        %v1749 = vmax.f32 %v1725, 0.0
        %v1750 = vmax.f32 %v1730, 0.0
        %v1751 = vmax.f32 %v1733, 0.0
        %1752 = vst [vmem:[%s593] sm:$0xff] %v1736
        %1753 = vst [vmem:[%s593 + $0x8] sm:$0xff] %v1737
        %1754 = vst [vmem:[%s593 + $0x10] sm:$0xff] %v1738
        %1755 = vst [vmem:[%s593 + $0x18] sm:$0xff] %v1739
        %1756 = vst [vmem:[%s593 + $0x20] sm:$0xff] %v1740
        %1757 = vst [vmem:[%s593 + $0x28] sm:$0xff] %v1741
        %1758 = vst [vmem:[%s593 + $0x30] sm:$0xff] %v1742
        %1759 = vst [vmem:[%s593 + $0x38] sm:$0xff] %v1743
        %1760 = vst [vmem:[%s593 + $0x40] sm:$0xff] %v1744
        %1761 = vst [vmem:[%s593 + $0x48] sm:$0xff] %v1745
        %1762 = vst [vmem:[%s593 + $0x50] sm:$0xff] %v1746
        %1763 = vst [vmem:[%s593 + $0x58] sm:$0xff] %v1747
        %1764 = vst [vmem:[%s593 + $0x60] sm:$0xff] %v1748
        %1765 = vst [vmem:[%s593 + $0x68] sm:$0xff] %v1749
        %1766 = vst [vmem:[%s593 + $0x70] sm:$0xff] %v1750
        %1767 = vst [vmem:[%s593 + $0x78] sm:$0xff] %v1751
      $region68: #{gine_layer_light.1} parent=55 // pred_fallthru
        _
      %s1768 = smul.u32 16, %s37
      %p1769 = scmp.lt.s32.totalorder %s1768, 31
      %s1770 = scalar_select %p1769, %s1768, 31
      %s1771 = smul.addr %s1770, 8
      %s1772 = scalar_lea.vmem %s11, %s1771
      // Predicated region
      $region69: #{gine_layer_light.1} parent=55 // pred_check
        %p1773 = pneg %p320
      $region70: #{gine_layer_light.1} parent=55 // pred_check_branch
        %1775 = sbr.rel (%p1773) target = $region72
      $region71: #{gine_layer_light.1} parent=55 // pred_region
        %s1776 = smul.u32 16, %s37
      $region72: #{gine_layer_light.1} parent=55 // pred_fallthru
        _
    $region56: #{gine_layer_light.1} parent=5 // pred_fallthru
      _
    %p1777 = scmp.le.s32.totalorder 2, %s28
    // Predicated region
    $region73: #{gine_layer_light.1} parent=5 // pred_check
      %p1778 = pneg %p1777
    $region74: #{gine_layer_light.1} parent=5 // pred_check_branch
      %1780 = sbr.rel (%p1778) target = $region76
    $region75: #{gine_layer_light.1} parent=5 // pred_region
      %s1781 = ssub.s32 %s28, 2
      // Predicated region
      $region77: #{gine_layer_light.1} parent=75 // pred_check
        %p1782 = pneg %p326
      $region78: #{gine_layer_light.1} parent=75 // pred_check_branch
        %1784 = sbr.rel (%p1782) target = $region80
      $region79: #{gine_layer_light.1} parent=75 // pred_region
        %s1785 = smul.u32 16, %s39
        %p1786 = scmp.lt.s32.totalorder %s1785, 31
        %s1787 = scalar_select %p1786, %s1785, 31
        %s1788 = smul.addr %s1787, 8
        %s1789 = scalar_lea.vmem %s11, %s1788
      $region80: #{gine_layer_light.1} parent=75 // pred_fallthru
        _
    $region76: #{gine_layer_light.1} parent=5 // pred_fallthru
      _
  $region6: #{gine_layer_light.1} parent=0 // loop_footer
    %s32 = sadd.s32 1, %s28
  $region7: #{gine_layer_light.1} parent=0 // loop_footer_branch
    %27 = sbr.rel target = $region3
  $region8: #{gine_layer_light.1} parent=0 // loop_exit
    _

</llo_original>
